<compile_context>
chip_gen: v7x
topology: tpu7x:2x2x1
jax: 0.10.0
libtpu: 0.0.40
codegen_flags: <defaults>
</compile_context>

<pallas_src>
import functools

import jax
import jax.numpy as jnp
from jax.experimental import pallas as pl
from jax.experimental.pallas import tpu as pltpu


def _round_up(x, m):
    return ((x + m - 1) // m) * m


# ----------------------------------------------------------------------------
# One tile of whole triplets: GatedCNN (fused gate+value conv) + sigmoid gate +
# max-pool over the sequence + classifier Linear + cosine triplet hinge loss.
# ----------------------------------------------------------------------------
def fused_triplet_kernel(x_ref, w_ref, wc_ref, bc_ref, loss_ref, *, seq_len):
    # x_ref   : (3, TILE_B, S+2p, Hp) bf16   padded embeddings of [a; p; n]
    # w_ref   : (K, Hp, 2*Hp)        bf16   per-tap [w1_k || w2_k], (in, out)
    # wc_ref  : (Hp, Hp)             bf16   classifier weight, pre-transposed
    # bc_ref  : (1, Hp)              f32    classifier bias (zero-padded lanes)
    # loss_ref: (TILE_B, 1)          f32    per-triplet hinge losses
    three, tb, sp, hp = x_ref.shape
    K = w_ref.shape[0]
    S = seq_len

    # Merge the (a, p, n) axis into the row axis: all three branches share one
    # matmul chain -> 3x wider LHS per MXU weight push.
    x = x_ref[...].reshape(three * tb, sp, hp)

    # Conv1d ('same' padding, bias=False) for both branches at once as K
    # shifted matmuls accumulated in f32 (no K*H-wide im2col activations).
    def tap(k):
        lhs = x[:, k:k + S, :].reshape(three * tb * S, hp)
        return jnp.dot(lhs, w_ref[k], preferred_element_type=jnp.float32)

    acc = tap(0)
    for k in range(1, K):                      # K is small and static
        acc = acc + tap(k)

    conv1 = acc[:, :hp]                        # gate branch  (cnn1)
    conv2 = acc[:, hp:]                        # value branch (cnn2)
    # GatedCNN: torch.mul(cnn2(x), sigmoid(cnn1(x))) -- kept in f32 (v5e VPU).
    gated = conv2 * jax.nn.sigmoid(conv1)      # (3*tb*S, Hp) f32

    # pooling_style == 'max': MaxPool1d over the whole sequence (sublane reduce).
    pooled = jnp.max(gated.reshape(three * tb, S, hp), axis=1)   # (3*tb, Hp)

    # classifier: Linear(H, H); wc already (in, out) so no in-kernel transpose.
    y = jnp.dot(pooled.astype(wc_ref.dtype), wc_ref[...],
                preferred_element_type=jnp.float32) + bc_ref[...]

    a_v = y[0 * tb:1 * tb]
    p_v = y[1 * tb:2 * tb]
    n_v = y[2 * tb:3 * tb]

    # torch cosine_similarity(dim=-1): w12 / max(sqrt(w1*w2), eps), eps=1e-8.
    eps2 = jnp.float32(1e-16)

    def cos(u, v):
        w12 = jnp.sum(u * v, axis=-1, keepdims=True)
        w1 = jnp.sum(u * u, axis=-1, keepdims=True)
        w2 = jnp.sum(v * v, axis=-1, keepdims=True)
        return w12 * jax.lax.rsqrt(jnp.maximum(w1 * w2, eps2))   # rsqrt -> EUP

    pos_dist = 1.0 - cos(a_v, p_v)
    neg_dist = 1.0 - cos(a_v, n_v)
    loss_ref[...] = jnp.maximum(pos_dist - neg_dist + 0.1, 0.0)  # (tb, 1)


# ----------------------------------------------------------------------------
# Wrapper: embedding gather + padding in XLA, one tiled pallas_call, tiny mean.
# ----------------------------------------------------------------------------
@jax.jit
def dic_model_forward(a_ids, p_ids, n_ids, params):
    """dic_model.forward for the (a, p, n) triplet-loss path (gated_cnn/max)."""
    w1 = params["w1"]                 # (K, H_in, H_out) = torch (out,in,K) permuted
    w2 = params["w2"]
    K, H, _ = w1.shape
    B, S = a_ids.shape
    pad = (K - 1) // 2                # matches Conv1d 'same' padding for odd K
    Sp = S + 2 * pad
    Hp = _round_up(H, 128)            # lane-dense MXU columns / vreg lanes

    # Tile sizing: whole triplets per grid step, multiple of 8 sublanes, and a
    # bf16 activation tile capped at ~8 MiB so double-buffering fits v7x VMEM.
    bytes_per_triplet = 3 * Sp * Hp * 2
    cap = max(8, ((8 << 20) // bytes_per_triplet) // 8 * 8)
    tile_b = min(_round_up(B, 8), cap, 256)
    Bp = _round_up(B, tile_b)
    grid = (Bp // tile_b,)

    # Embedding gather (cheap XLA glue) + zero padding for 'same' conv / batch.
    emb_tbl = params["embedding"]
    if Hp > H:
        emb_tbl = jnp.pad(emb_tbl, ((0, 0), (0, Hp - H)))
    emb_tbl = emb_tbl.astype(jnp.bfloat16)
    ids = jnp.stack([a_ids, p_ids, n_ids], axis=0)                    # (3, B, S)
    x = jnp.take(emb_tbl, ids, axis=0)                                # (3, B, S, Hp)
    x = jnp.pad(x, ((0, 0), (0, Bp - B), (pad, pad), (0, 0)))         # (3, Bp, Sp, Hp)

    # Fuse the two conv branches along the output axis; zero-pad H to Hp.
    w1p = jnp.pad(w1, ((0, 0), (0, Hp - H), (0, Hp - H)))
    w2p = jnp.pad(w2, ((0, 0), (0, Hp - H), (0, Hp - H)))
    w_fused = jnp.concatenate([w1p, w2p], axis=-1).astype(jnp.bfloat16)  # (K,Hp,2Hp)
    wc = jnp.pad(params["wc_t"], ((0, Hp - H), (0, Hp - H))).astype(jnp.bfloat16)
    bc = jnp.pad(params["bc"], ((0, 0), (0, Hp - H))).astype(jnp.float32)

    tile_bytes = tile_b * bytes_per_triplet
    w_bytes = w_fused.size * 2 + wc.size * 2 + bc.size * 4
    vmem_limit = int(min(64 << 20, max(32 << 20, 4 * tile_bytes + w_bytes + (4 << 20))))

    kernel = functools.partial(fused_triplet_kernel, seq_len=S)
    losses = pl.pallas_call(
        kernel,
        out_shape=jax.ShapeDtypeStruct((Bp, 1), jnp.float32),
        grid=grid,
        in_specs=[
            # Activation tile: one block of whole triplets, double-buffered.
            # TODO(synk): add pipeline_mode=pl.Buffered(3) if DMA stays exposed.
            pl.BlockSpec((3, tile_b, Sp, Hp), lambda i: (0, i, 0, 0)),
            # Weights: constant block index -> DMA'd once, stay resident.
            pl.BlockSpec((K, Hp, 2 * Hp), lambda i: (0, 0, 0)),
            pl.BlockSpec((Hp, Hp), lambda i: (0, 0)),
            pl.BlockSpec((1, Hp), lambda i: (0, 0)),
        ],
        out_specs=pl.BlockSpec((tile_b, 1), lambda i: (i, 0)),
        compiler_params=pltpu.CompilerParams(
            dimension_semantics=("parallel",),   # v7x: 2 TCs split the batch tiles
            vmem_limit_bytes=vmem_limit,
        ),
    )(x, w_fused, wc, bc)

    # losses.mean() over the B real triplets (tiny finishing reduction in XLA).
    return jnp.mean(losses[:B, 0])


def init_params(key, vocab_size, hidden_size, kernel_size):
    k_emb, k_w1, k_w2, k_wc, k_bc = jax.random.split(key, 5)
    H, K = hidden_size, kernel_size
    emb = 0.02 * jax.random.normal(k_emb, (vocab_size + 1, H), jnp.float32)
    emb = emb.at[0].set(0.0)                  # padding_idx=0
    # Conv1d weight in PyTorch is (out, in, K); stored here as (K, in, out),
    # i.e. w[k, i, o] = w_torch[o, i, k] (true permute, not a raw view).
    w1 = 0.1 * jax.random.normal(k_w1, (K, H, H), jnp.float32)
    w2 = 0.1 * jax.random.normal(k_w2, (K, H, H), jnp.float32)
    # Classifier Linear weight pre-transposed to (in, out): wc_t = W_torch.T
    wc_t = 0.1 * jax.random.normal(k_wc, (H, H), jnp.float32)
    bc = 0.1 * jax.random.normal(k_bc, (1, H), jnp.float32)
    return {"embedding": emb, "w1": w1, "w2": w2, "wc_t": wc_t, "bc": bc}


# TODO(synk): other model_type branches (bert/lstm/rnn/...) and the non-triplet
# forward paths of dic_model are not implemented; this script fixes
# model_type='gated_cnn', pooling_style='max', triplet-loss forward.

if __name__ == "__main__":
    hidden_size = 32
    vocab_size = 30
    kernel_size = 3
    batch, seq = 2, 8

    key = jax.random.PRNGKey(0)
    k_params, k_a, k_p, k_n = jax.random.split(key, 4)
    params = init_params(k_params, vocab_size, hidden_size, kernel_size)

    a_ids = jax.random.randint(k_a, (batch, seq), 0, vocab_size + 1, jnp.int32)
    p_ids = jax.random.randint(k_p, (batch, seq), 0, vocab_size + 1, jnp.int32)
    n_ids = jax.random.randint(k_n, (batch, seq), 0, vocab_size + 1, jnp.int32)

    loss = dic_model_forward(a_ids, p_ids, n_ids, params)
    jax.block_until_ready(loss)
    print("KERNEL_OK")
</pallas_src>

<mosaic_0001>
module attributes {stable_mosaic.version = 11 : i64} {
  func.func @fused_triplet_kernel(%arg0: i32, %arg1: memref<3x8x10x128xbf16, #tpu.memory_space<vmem>>, %arg2: memref<3x128x256xbf16, #tpu.memory_space<vmem>>, %arg3: memref<128x128xbf16, #tpu.memory_space<vmem>>, %arg4: memref<1x128xf32, #tpu.memory_space<vmem>>, %arg5: memref<8x1xf32, #tpu.memory_space<vmem>>) attributes {dimension_semantics = [#tpu.dimension_semantics<parallel>], iteration_bounds = array<i64: 1>, scalar_prefetch = 0 : i64, scratch_operands = 0 : i64, tpu.core_type = #tpu.core_type<tc>, window_params = [{transform_indices = @transform_0, window_bounds = array<i64: 3, 8, 10, 128>}, {pipeline_mode = #tpu.pipeline_mode<synchronous>, transform_indices = @transform_1, window_bounds = array<i64: 3, 128, 256>}, {pipeline_mode = #tpu.pipeline_mode<synchronous>, transform_indices = @transform_2, window_bounds = array<i64: 128, 128>}, {pipeline_mode = #tpu.pipeline_mode<synchronous>, transform_indices = @transform_3, window_bounds = array<i64: 1, 128>}, {transform_indices = @transform_4, window_bounds = array<i64: 8, 1>}]} {
    %c0 = arith.constant 0 : index
    %c0_0 = arith.constant 0 : index
    %c0_1 = arith.constant 0 : index
    %c0_2 = arith.constant 0 : index
    %0 = vector.load %arg1[%c0, %c0_0, %c0_1, %c0_2] : memref<3x8x10x128xbf16, #tpu.memory_space<vmem>>, vector<3x8x10x128xbf16>
    %1 = vector.shape_cast %0 : vector<3x8x10x128xbf16> to vector<24x10x128xbf16>
    %2 = vector.extract_strided_slice %1 {offsets = [0, 0, 0], sizes = [24, 8, 128], strides = [1, 1, 1]} : vector<24x10x128xbf16> to vector<24x8x128xbf16>
    %3 = vector.shape_cast %2 : vector<24x8x128xbf16> to vector<192x128xbf16>
    %c0_3 = arith.constant 0 : index
    %c0_4 = arith.constant 0 : index
    %c0_5 = arith.constant 0 : index
    %4 = vector.load %arg2[%c0_3, %c0_4, %c0_5] : memref<3x128x256xbf16, #tpu.memory_space<vmem>>, vector<1x128x256xbf16>
    %5 = vector.shape_cast %4 : vector<1x128x256xbf16> to vector<128x256xbf16>
    %cst = arith.constant dense<0.000000e+00> : vector<192x256xf32>
    %6 = tpu.matmul %3, %5, %cst {dimension_numbers = #tpu.dot_dimension_numbers<[1], [0], [0], [1], [0, 0, 1, 1], [], []>} : vector<192x128xbf16>, vector<128x256xbf16>, vector<192x256xf32> -> vector<192x256xf32>
    %7 = vector.extract_strided_slice %1 {offsets = [0, 1, 0], sizes = [24, 8, 128], strides = [1, 1, 1]} : vector<24x10x128xbf16> to vector<24x8x128xbf16>
    %8 = vector.shape_cast %7 : vector<24x8x128xbf16> to vector<192x128xbf16>
    %c1 = arith.constant 1 : index
    %c0_6 = arith.constant 0 : index
    %c0_7 = arith.constant 0 : index
    %9 = vector.load %arg2[%c1, %c0_6, %c0_7] : memref<3x128x256xbf16, #tpu.memory_space<vmem>>, vector<1x128x256xbf16>
    %10 = vector.shape_cast %9 : vector<1x128x256xbf16> to vector<128x256xbf16>
    %cst_8 = arith.constant dense<0.000000e+00> : vector<192x256xf32>
    %11 = tpu.matmul %8, %10, %cst_8 {dimension_numbers = #tpu.dot_dimension_numbers<[1], [0], [0], [1], [0, 0, 1, 1], [], []>} : vector<192x128xbf16>, vector<128x256xbf16>, vector<192x256xf32> -> vector<192x256xf32>
    %12 = arith.addf %6, %11 : vector<192x256xf32>
    %13 = vector.extract_strided_slice %1 {offsets = [0, 2, 0], sizes = [24, 8, 128], strides = [1, 1, 1]} : vector<24x10x128xbf16> to vector<24x8x128xbf16>
    %14 = vector.shape_cast %13 : vector<24x8x128xbf16> to vector<192x128xbf16>
    %c2 = arith.constant 2 : index
    %c0_9 = arith.constant 0 : index
    %c0_10 = arith.constant 0 : index
    %15 = vector.load %arg2[%c2, %c0_9, %c0_10] : memref<3x128x256xbf16, #tpu.memory_space<vmem>>, vector<1x128x256xbf16>
    %16 = vector.shape_cast %15 : vector<1x128x256xbf16> to vector<128x256xbf16>
    %cst_11 = arith.constant dense<0.000000e+00> : vector<192x256xf32>
    %17 = tpu.matmul %14, %16, %cst_11 {dimension_numbers = #tpu.dot_dimension_numbers<[1], [0], [0], [1], [0, 0, 1, 1], [], []>} : vector<192x128xbf16>, vector<128x256xbf16>, vector<192x256xf32> -> vector<192x256xf32>
    %18 = arith.addf %12, %17 : vector<192x256xf32>
    %19 = vector.extract_strided_slice %18 {offsets = [0, 0], sizes = [192, 128], strides = [1, 1]} : vector<192x256xf32> to vector<192x128xf32>
    %20 = vector.extract_strided_slice %18 {offsets = [0, 128], sizes = [192, 128], strides = [1, 1]} : vector<192x256xf32> to vector<192x128xf32>
    %21 = arith.negf %19 : vector<192x128xf32>
    %22 = math.exp %21 : vector<192x128xf32>
    %cst_12 = arith.constant 1.000000e+00 : f32
    %23 = vector.broadcast %cst_12 : f32 to vector<192x128xf32>
    %24 = arith.addf %23, %22 : vector<192x128xf32>
    %25 = arith.divf %23, %24 : vector<192x128xf32>
    %26 = arith.mulf %20, %25 : vector<192x128xf32>
    %27 = vector.shape_cast %26 : vector<192x128xf32> to vector<24x8x128xf32>
    %cst_13 = arith.constant dense<0xFF800000> : vector<24x128xf32>
    %28 = vector.multi_reduction <maximumf>, %27, %cst_13 [1] : vector<24x8x128xf32> to vector<24x128xf32>
    %29 = arith.truncf %28 : vector<24x128xf32> to vector<24x128xbf16>
    %c0_14 = arith.constant 0 : index
    %c0_15 = arith.constant 0 : index
    %30 = vector.load %arg3[%c0_14, %c0_15] : memref<128x128xbf16, #tpu.memory_space<vmem>>, vector<128x128xbf16>
    %cst_16 = arith.constant dense<0.000000e+00> : vector<24x128xf32>
    %31 = tpu.matmul %29, %30, %cst_16 {dimension_numbers = #tpu.dot_dimension_numbers<[1], [0], [0], [1], [0, 0, 1, 1], [], []>} : vector<24x128xbf16>, vector<128x128xbf16>, vector<24x128xf32> -> vector<24x128xf32>
    %c0_17 = arith.constant 0 : index
    %c0_18 = arith.constant 0 : index
    %32 = vector.load %arg4[%c0_17, %c0_18] : memref<1x128xf32, #tpu.memory_space<vmem>>, vector<1x128xf32>
    %33 = vector.broadcast %32 : vector<1x128xf32> to vector<24x128xf32>
    %34 = arith.addf %31, %33 : vector<24x128xf32>
    %35 = vector.extract_strided_slice %34 {offsets = [0, 0], sizes = [8, 128], strides = [1, 1]} : vector<24x128xf32> to vector<8x128xf32>
    %36 = vector.extract_strided_slice %34 {offsets = [8, 0], sizes = [8, 128], strides = [1, 1]} : vector<24x128xf32> to vector<8x128xf32>
    %37 = vector.extract_strided_slice %34 {offsets = [16, 0], sizes = [8, 128], strides = [1, 1]} : vector<24x128xf32> to vector<8x128xf32>
    %38 = arith.mulf %35, %36 : vector<8x128xf32>
    %cst_19 = arith.constant dense<0.000000e+00> : vector<8xf32>
    %39 = vector.multi_reduction <add>, %38, %cst_19 [1] : vector<8x128xf32> to vector<8xf32>
    %40 = vector.shape_cast %39 : vector<8xf32> to vector<8x1xf32>
    %41 = arith.mulf %35, %35 : vector<8x128xf32>
    %cst_20 = arith.constant dense<0.000000e+00> : vector<8xf32>
    %42 = vector.multi_reduction <add>, %41, %cst_20 [1] : vector<8x128xf32> to vector<8xf32>
    %43 = vector.shape_cast %42 : vector<8xf32> to vector<8x1xf32>
    %44 = arith.mulf %36, %36 : vector<8x128xf32>
    %cst_21 = arith.constant dense<0.000000e+00> : vector<8xf32>
    %45 = vector.multi_reduction <add>, %44, %cst_21 [1] : vector<8x128xf32> to vector<8xf32>
    %46 = vector.shape_cast %45 : vector<8xf32> to vector<8x1xf32>
    %47 = arith.mulf %43, %46 : vector<8x1xf32>
    %cst_22 = arith.constant 1.000000e-16 : f32
    %48 = vector.broadcast %cst_22 : f32 to vector<8x1xf32>
    %49 = arith.maximumf %47, %48 : vector<8x1xf32>
    %50 = math.rsqrt %49 : vector<8x1xf32>
    %51 = arith.mulf %40, %50 : vector<8x1xf32>
    %cst_23 = arith.constant 1.000000e+00 : f32
    %52 = vector.broadcast %cst_23 : f32 to vector<8x1xf32>
    %53 = arith.subf %52, %51 : vector<8x1xf32>
    %54 = arith.mulf %35, %37 : vector<8x128xf32>
    %cst_24 = arith.constant dense<0.000000e+00> : vector<8xf32>
    %55 = vector.multi_reduction <add>, %54, %cst_24 [1] : vector<8x128xf32> to vector<8xf32>
    %56 = vector.shape_cast %55 : vector<8xf32> to vector<8x1xf32>
    %57 = arith.mulf %35, %35 : vector<8x128xf32>
    %cst_25 = arith.constant dense<0.000000e+00> : vector<8xf32>
    %58 = vector.multi_reduction <add>, %57, %cst_25 [1] : vector<8x128xf32> to vector<8xf32>
    %59 = vector.shape_cast %58 : vector<8xf32> to vector<8x1xf32>
    %60 = arith.mulf %37, %37 : vector<8x128xf32>
    %cst_26 = arith.constant dense<0.000000e+00> : vector<8xf32>
    %61 = vector.multi_reduction <add>, %60, %cst_26 [1] : vector<8x128xf32> to vector<8xf32>
    %62 = vector.shape_cast %61 : vector<8xf32> to vector<8x1xf32>
    %63 = arith.mulf %59, %62 : vector<8x1xf32>
    %cst_27 = arith.constant 1.000000e-16 : f32
    %64 = vector.broadcast %cst_27 : f32 to vector<8x1xf32>
    %65 = arith.maximumf %63, %64 : vector<8x1xf32>
    %66 = math.rsqrt %65 : vector<8x1xf32>
    %67 = arith.mulf %56, %66 : vector<8x1xf32>
    %cst_28 = arith.constant 1.000000e+00 : f32
    %68 = vector.broadcast %cst_28 : f32 to vector<8x1xf32>
    %69 = arith.subf %68, %67 : vector<8x1xf32>
    %70 = arith.subf %53, %69 : vector<8x1xf32>
    %cst_29 = arith.constant 1.000000e-01 : f32
    %71 = vector.broadcast %cst_29 : f32 to vector<8x1xf32>
    %72 = arith.addf %70, %71 : vector<8x1xf32>
    %cst_30 = arith.constant 0.000000e+00 : f32
    %73 = vector.broadcast %cst_30 : f32 to vector<8x1xf32>
    %74 = arith.maximumf %72, %73 : vector<8x1xf32>
    %c0_31 = arith.constant 0 : index
    %c0_32 = arith.constant 0 : index
    %75 = vector.load %arg5[%c0_31, %c0_32] : memref<8x1xf32, #tpu.memory_space<vmem>>, vector<8x1xf32>
    tpu.vector_store %arg5[%c0_31, %c0_32], %74 {strides = array<i32>} : memref<8x1xf32, #tpu.memory_space<vmem>>, vector<8x1xf32>,
    return
  }
  func.func @transform_0(%arg0: i32) -> (i32, i32, i32, i32) {
    %c0_i32 = arith.constant 0 : i32
    %c0_i32_0 = arith.constant 0 : i32
    %c0_i32_1 = arith.constant 0 : i32
    %c0_i32_2 = arith.constant 0 : i32
    return %c0_i32, %arg0, %c0_i32_0, %c0_i32_1 : i32, i32, i32, i32
  }
  func.func @transform_1(%arg0: i32) -> (i32, i32, i32) {
    %c0_i32 = arith.constant 0 : i32
    %c0_i32_0 = arith.constant 0 : i32
    %c0_i32_1 = arith.constant 0 : i32
    %c0_i32_2 = arith.constant 0 : i32
    return %c0_i32, %c0_i32_0, %c0_i32_1 : i32, i32, i32
  }
  func.func @transform_2(%arg0: i32) -> (i32, i32) {
    %c0_i32 = arith.constant 0 : i32
    %c0_i32_0 = arith.constant 0 : i32
    %c0_i32_1 = arith.constant 0 : i32
    return %c0_i32, %c0_i32_0 : i32, i32
  }
  func.func @transform_3(%arg0: i32) -> (i32, i32) {
    %c0_i32 = arith.constant 0 : i32
    %c0_i32_0 = arith.constant 0 : i32
    %c0_i32_1 = arith.constant 0 : i32
    return %c0_i32, %c0_i32_0 : i32, i32
  }
  func.func @transform_4(%arg0: i32) -> (i32, i32) {
    %c0_i32 = arith.constant 0 : i32
    %c0_i32_0 = arith.constant 0 : i32
    return %arg0, %c0_i32 : i32, i32
  }
}

</mosaic_0001>

<llo_original>
// kernel: dic_model_forward.1
$region0: #{dic_model_forward.1}
  #allocation0 [shape = 'u32[]', space=smem, size = 0x4, offset = 0x4, fixed_abs, tag = 'smem constant byte address 0x4 - core index']
  #allocation1 [shape = 'u32[144,128]{1,0:T(1,128)}', space=vmem, size = 0x12000, scoped, tag = 'internal scratch']
  %s0 = inlined_call_operand.vmem [shape: bf16[3,8,10,128], index: 0, kind: input, shape index: {}]
  %s1 = inlined_call_operand.vmem [shape: bf16[3,128,256], index: 1, kind: input, shape index: {}]
  %s2 = inlined_call_operand.vmem [shape: bf16[128,128], index: 2, kind: input, shape index: {}]
  %s3 = inlined_call_operand.vmem [shape: f32[1,128], index: 3, kind: input, shape index: {}]
  %s4 = inlined_call_operand.vmem [shape: f32[8,1], index: 4, kind: output, shape index: {}]
  %s5 = sld [smem:[#allocation0]]
  $region26: #{dic_model_forward.1} parent=0
    _
  %s7 = ssub.s32 1, %s5
  %s8 = scalar_select 0, %s7, %s5
  // Predicated region
  $region2: #{dic_model_forward.1} parent=0 // pred_check
    _
  $region3: #{dic_model_forward.1} parent=0 // pred_check_branch
    %10 = sbr.rel (0) target = $region5
  $region4: #{dic_model_forward.1} parent=0 // pred_region
    _
  $region5: #{dic_model_forward.1} parent=0 // pred_fallthru
    _
  // Predicated region
  $region6: #{dic_model_forward.1} parent=0 // pred_check
    _
  $region7: #{dic_model_forward.1} parent=0 // pred_check_branch
    %12 = sbr.rel (0) target = $region9
  $region8: #{dic_model_forward.1} parent=0 // pred_region
    _
  $region9: #{dic_model_forward.1} parent=0 // pred_fallthru
    _
  // Predicated region
  $region10: #{dic_model_forward.1} parent=0 // pred_check
    _
  $region11: #{dic_model_forward.1} parent=0 // pred_check_branch
    %14 = sbr.rel (0) target = $region13
  $region12: #{dic_model_forward.1} parent=0 // pred_region
    _
  $region13: #{dic_model_forward.1} parent=0 // pred_fallthru
    _
  // Predicated region
  $region14: #{dic_model_forward.1} parent=0 // pred_check
    _
  $region15: #{dic_model_forward.1} parent=0 // pred_check_branch
    %16 = sbr.rel (0) target = $region17
  $region16: #{dic_model_forward.1} parent=0 // pred_region
    _
  $region17: #{dic_model_forward.1} parent=0 // pred_fallthru
    _
  %v18 = vld [vmem:[%s0] sm:$0xf]
  %v19 = vld [vmem:[%s0 + $0x4] sm:$0x1]
  %v20 = vld [vmem:[%s0 + $0x8] sm:$0xf]
  %v21 = vld [vmem:[%s0 + $0xc] sm:$0x1]
  %v22 = vld [vmem:[%s0 + $0x10] sm:$0xf]
  %v23 = vld [vmem:[%s0 + $0x14] sm:$0x1]
  %v24 = vld [vmem:[%s0 + $0x18] sm:$0xf]
  %v25 = vld [vmem:[%s0 + $0x1c] sm:$0x1]
  %v26 = vld [vmem:[%s0 + $0x20] sm:$0xf]
  %v27 = vld [vmem:[%s0 + $0x24] sm:$0x1]
  %v28 = vld [vmem:[%s0 + $0x28] sm:$0xf]
  %v29 = vld [vmem:[%s0 + $0x2c] sm:$0x1]
  %v30 = vld [vmem:[%s0 + $0x30] sm:$0xf]
  %v31 = vld [vmem:[%s0 + $0x34] sm:$0x1]
  %v32 = vld [vmem:[%s0 + $0x38] sm:$0xf]
  %v33 = vld [vmem:[%s0 + $0x3c] sm:$0x1]
  %v34 = vld [vmem:[%s0 + $0x40] sm:$0xf]
  %v35 = vld [vmem:[%s0 + $0x44] sm:$0x1]
  %v36 = vld [vmem:[%s0 + $0x48] sm:$0xf]
  %v37 = vld [vmem:[%s0 + $0x4c] sm:$0x1]
  %v38 = vld [vmem:[%s0 + $0x50] sm:$0xf]
  %v39 = vld [vmem:[%s0 + $0x54] sm:$0x1]
  %v40 = vld [vmem:[%s0 + $0x58] sm:$0xf]
  %v41 = vld [vmem:[%s0 + $0x5c] sm:$0x1]
  %v42 = vld [vmem:[%s0 + $0x60] sm:$0xf]
  %v43 = vld [vmem:[%s0 + $0x64] sm:$0x1]
  %v44 = vld [vmem:[%s0 + $0x68] sm:$0xf]
  %v45 = vld [vmem:[%s0 + $0x6c] sm:$0x1]
  %v46 = vld [vmem:[%s0 + $0x70] sm:$0xf]
  %v47 = vld [vmem:[%s0 + $0x74] sm:$0x1]
  %v48 = vld [vmem:[%s0 + $0x78] sm:$0xf]
  %v49 = vld [vmem:[%s0 + $0x7c] sm:$0x1]
  %v50 = vld [vmem:[%s0 + $0x80] sm:$0xf]
  %v51 = vld [vmem:[%s0 + $0x84] sm:$0x1]
  %v52 = vld [vmem:[%s0 + $0x88] sm:$0xf]
  %v53 = vld [vmem:[%s0 + $0x8c] sm:$0x1]
  %v54 = vld [vmem:[%s0 + $0x90] sm:$0xf]
  %v55 = vld [vmem:[%s0 + $0x94] sm:$0x1]
  %v56 = vld [vmem:[%s0 + $0x98] sm:$0xf]
  %v57 = vld [vmem:[%s0 + $0x9c] sm:$0x1]
  %v58 = vld [vmem:[%s0 + $0xa0] sm:$0xf]
  %v59 = vld [vmem:[%s0 + $0xa4] sm:$0x1]
  %v60 = vld [vmem:[%s0 + $0xa8] sm:$0xf]
  %v61 = vld [vmem:[%s0 + $0xac] sm:$0x1]
  %v62 = vld [vmem:[%s0 + $0xb0] sm:$0xf]
  %v63 = vld [vmem:[%s0 + $0xb4] sm:$0x1]
  %v64 = vld [vmem:[%s0 + $0xb8] sm:$0xf]
  %v65 = vld [vmem:[%s0 + $0xbc] sm:$0x1]
  %v66 = vld [vmem:[%s1] sm:$0xff]
  %v67 = vld [vmem:[%s1 + $0x8] sm:$0xff]
  %v68 = vld [vmem:[%s1 + $0x10] sm:$0xff]
  %v69 = vld [vmem:[%s1 + $0x18] sm:$0xff]
  %v70 = vld [vmem:[%s1 + $0x20] sm:$0xff]
  %v71 = vld [vmem:[%s1 + $0x28] sm:$0xff]
  %v72 = vld [vmem:[%s1 + $0x30] sm:$0xff]
  %v73 = vld [vmem:[%s1 + $0x38] sm:$0xff]
  %v74 = vld [vmem:[%s1 + $0x40] sm:$0xff]
  %v75 = vld [vmem:[%s1 + $0x48] sm:$0xff]
  %v76 = vld [vmem:[%s1 + $0x50] sm:$0xff]
  %v77 = vld [vmem:[%s1 + $0x58] sm:$0xff]
  %v78 = vld [vmem:[%s1 + $0x60] sm:$0xff]
  %v79 = vld [vmem:[%s1 + $0x68] sm:$0xff]
  %v80 = vld [vmem:[%s1 + $0x70] sm:$0xff]
  %v81 = vld [vmem:[%s1 + $0x78] sm:$0xff]
  %vm82 = vsmask.f32 3328
  %vm83 = vsmask.f32 7440
  %vm84 = vmor %vm82, %vm83
  %v86 = vshrl.u32 %v18, 16
  %v88 = vrot.slane %v86, 4
  %v89 = vshll.u32 %v18, 16
  %v91 = vrot.slane %v89, 5
  %v92 = vor.u32 %v88, %v91
  %v93 = vrot.slane %v92, 4
  %v95 = vshll.u32 %v19, 16
  %v97 = vrot.slane %v95, 5
  %v98 = vsel %vm84, %v93, %v97
  %v100 = vshrl.u32 %v20, 16
  %v102 = vrot.slane %v100, 4
  %v103 = vshll.u32 %v20, 16
  %v105 = vrot.slane %v103, 5
  %v106 = vor.u32 %v102, %v105
  %v107 = vrot.slane %v106, 4
  %v109 = vshll.u32 %v21, 16
  %v111 = vrot.slane %v109, 5
  %v112 = vsel %vm84, %v107, %v111
  %v114 = vshrl.u32 %v22, 16
  %v116 = vrot.slane %v114, 4
  %v117 = vshll.u32 %v22, 16
  %v119 = vrot.slane %v117, 5
  %v120 = vor.u32 %v116, %v119
  %v121 = vrot.slane %v120, 4
  %v123 = vshll.u32 %v23, 16
  %v125 = vrot.slane %v123, 5
  %v126 = vsel %vm84, %v121, %v125
  %v128 = vshrl.u32 %v24, 16
  %v130 = vrot.slane %v128, 4
  %v131 = vshll.u32 %v24, 16
  %v133 = vrot.slane %v131, 5
  %v134 = vor.u32 %v130, %v133
  %v135 = vrot.slane %v134, 4
  %v137 = vshll.u32 %v25, 16
  %v139 = vrot.slane %v137, 5
  %v140 = vsel %vm84, %v135, %v139
  %v142 = vshrl.u32 %v26, 16
  %v144 = vrot.slane %v142, 4
  %v145 = vshll.u32 %v26, 16
  %v147 = vrot.slane %v145, 5
  %v148 = vor.u32 %v144, %v147
  %v149 = vrot.slane %v148, 4
  %v151 = vshll.u32 %v27, 16
  %v153 = vrot.slane %v151, 5
  %v154 = vsel %vm84, %v149, %v153
  %v156 = vshrl.u32 %v28, 16
  %v158 = vrot.slane %v156, 4
  %v159 = vshll.u32 %v28, 16
  %v161 = vrot.slane %v159, 5
  %v162 = vor.u32 %v158, %v161
  %v163 = vrot.slane %v162, 4
  %v165 = vshll.u32 %v29, 16
  %v167 = vrot.slane %v165, 5
  %v168 = vsel %vm84, %v163, %v167
  %v170 = vshrl.u32 %v30, 16
  %v172 = vrot.slane %v170, 4
  %v173 = vshll.u32 %v30, 16
  %v175 = vrot.slane %v173, 5
  %v176 = vor.u32 %v172, %v175
  %v177 = vrot.slane %v176, 4
  %v179 = vshll.u32 %v31, 16
  %v181 = vrot.slane %v179, 5
  %v182 = vsel %vm84, %v177, %v181
  %v184 = vshrl.u32 %v32, 16
  %v186 = vrot.slane %v184, 4
  %v187 = vshll.u32 %v32, 16
  %v189 = vrot.slane %v187, 5
  %v190 = vor.u32 %v186, %v189
  %v191 = vrot.slane %v190, 4
  %v193 = vshll.u32 %v33, 16
  %v195 = vrot.slane %v193, 5
  %v196 = vsel %vm84, %v191, %v195
  %v198 = vshrl.u32 %v34, 16
  %v200 = vrot.slane %v198, 4
  %v201 = vshll.u32 %v34, 16
  %v203 = vrot.slane %v201, 5
  %v204 = vor.u32 %v200, %v203
  %v205 = vrot.slane %v204, 4
  %v207 = vshll.u32 %v35, 16
  %v209 = vrot.slane %v207, 5
  %v210 = vsel %vm84, %v205, %v209
  %v212 = vshrl.u32 %v36, 16
  %v214 = vrot.slane %v212, 4
  %v215 = vshll.u32 %v36, 16
  %v217 = vrot.slane %v215, 5
  %v218 = vor.u32 %v214, %v217
  %v219 = vrot.slane %v218, 4
  %v221 = vshll.u32 %v37, 16
  %v223 = vrot.slane %v221, 5
  %v224 = vsel %vm84, %v219, %v223
  %v226 = vshrl.u32 %v38, 16
  %v228 = vrot.slane %v226, 4
  %v229 = vshll.u32 %v38, 16
  %v231 = vrot.slane %v229, 5
  %v232 = vor.u32 %v228, %v231
  %v233 = vrot.slane %v232, 4
  %v235 = vshll.u32 %v39, 16
  %v237 = vrot.slane %v235, 5
  %v238 = vsel %vm84, %v233, %v237
  %v240 = vshrl.u32 %v40, 16
  %v242 = vrot.slane %v240, 4
  %v243 = vshll.u32 %v40, 16
  %v245 = vrot.slane %v243, 5
  %v246 = vor.u32 %v242, %v245
  %v247 = vrot.slane %v246, 4
  %v249 = vshll.u32 %v41, 16
  %v251 = vrot.slane %v249, 5
  %v252 = vsel %vm84, %v247, %v251
  %v254 = vshrl.u32 %v42, 16
  %v256 = vrot.slane %v254, 4
  %v257 = vshll.u32 %v42, 16
  %v259 = vrot.slane %v257, 5
  %v260 = vor.u32 %v256, %v259
  %v261 = vrot.slane %v260, 4
  %v263 = vshll.u32 %v43, 16
  %v265 = vrot.slane %v263, 5
  %v266 = vsel %vm84, %v261, %v265
  %v268 = vshrl.u32 %v44, 16
  %v270 = vrot.slane %v268, 4
  %v271 = vshll.u32 %v44, 16
  %v273 = vrot.slane %v271, 5
  %v274 = vor.u32 %v270, %v273
  %v275 = vrot.slane %v274, 4
  %v277 = vshll.u32 %v45, 16
  %v279 = vrot.slane %v277, 5
  %v280 = vsel %vm84, %v275, %v279
  %v282 = vshrl.u32 %v46, 16
  %v284 = vrot.slane %v282, 4
  %v285 = vshll.u32 %v46, 16
  %v287 = vrot.slane %v285, 5
  %v288 = vor.u32 %v284, %v287
  %v289 = vrot.slane %v288, 4
  %v291 = vshll.u32 %v47, 16
  %v293 = vrot.slane %v291, 5
  %v294 = vsel %vm84, %v289, %v293
  %v296 = vshrl.u32 %v48, 16
  %v298 = vrot.slane %v296, 4
  %v299 = vshll.u32 %v48, 16
  %v301 = vrot.slane %v299, 5
  %v302 = vor.u32 %v298, %v301
  %v303 = vrot.slane %v302, 4
  %v305 = vshll.u32 %v49, 16
  %v307 = vrot.slane %v305, 5
  %v308 = vsel %vm84, %v303, %v307
  %v310 = vshrl.u32 %v50, 16
  %v312 = vrot.slane %v310, 4
  %v313 = vshll.u32 %v50, 16
  %v315 = vrot.slane %v313, 5
  %v316 = vor.u32 %v312, %v315
  %v317 = vrot.slane %v316, 4
  %v319 = vshll.u32 %v51, 16
  %v321 = vrot.slane %v319, 5
  %v322 = vsel %vm84, %v317, %v321
  %v324 = vshrl.u32 %v52, 16
  %v326 = vrot.slane %v324, 4
  %v327 = vshll.u32 %v52, 16
  %v329 = vrot.slane %v327, 5
  %v330 = vor.u32 %v326, %v329
  %v331 = vrot.slane %v330, 4
  %v333 = vshll.u32 %v53, 16
  %v335 = vrot.slane %v333, 5
  %v336 = vsel %vm84, %v331, %v335
  %v338 = vshrl.u32 %v54, 16
  %v340 = vrot.slane %v338, 4
  %v341 = vshll.u32 %v54, 16
  %v343 = vrot.slane %v341, 5
  %v344 = vor.u32 %v340, %v343
  %v345 = vrot.slane %v344, 4
  %v347 = vshll.u32 %v55, 16
  %v349 = vrot.slane %v347, 5
  %v350 = vsel %vm84, %v345, %v349
  %v352 = vshrl.u32 %v56, 16
  %v354 = vrot.slane %v352, 4
  %v355 = vshll.u32 %v56, 16
  %v357 = vrot.slane %v355, 5
  %v358 = vor.u32 %v354, %v357
  %v359 = vrot.slane %v358, 4
  %v361 = vshll.u32 %v57, 16
  %v363 = vrot.slane %v361, 5
  %v364 = vsel %vm84, %v359, %v363
  %v366 = vshrl.u32 %v58, 16
  %v368 = vrot.slane %v366, 4
  %v369 = vshll.u32 %v58, 16
  %v371 = vrot.slane %v369, 5
  %v372 = vor.u32 %v368, %v371
  %v373 = vrot.slane %v372, 4
  %v375 = vshll.u32 %v59, 16
  %v377 = vrot.slane %v375, 5
  %v378 = vsel %vm84, %v373, %v377
  %v380 = vshrl.u32 %v60, 16
  %v382 = vrot.slane %v380, 4
  %v383 = vshll.u32 %v60, 16
  %v385 = vrot.slane %v383, 5
  %v386 = vor.u32 %v382, %v385
  %v387 = vrot.slane %v386, 4
  %v389 = vshll.u32 %v61, 16
  %v391 = vrot.slane %v389, 5
  %v392 = vsel %vm84, %v387, %v391
  %v394 = vshrl.u32 %v62, 16
  %v396 = vrot.slane %v394, 4
  %v397 = vshll.u32 %v62, 16
  %v399 = vrot.slane %v397, 5
  %v400 = vor.u32 %v396, %v399
  %v401 = vrot.slane %v400, 4
  %v403 = vshll.u32 %v63, 16
  %v405 = vrot.slane %v403, 5
  %v406 = vsel %vm84, %v401, %v405
  %v408 = vshrl.u32 %v64, 16
  %v410 = vrot.slane %v408, 4
  %v411 = vshll.u32 %v64, 16
  %v413 = vrot.slane %v411, 5
  %v414 = vor.u32 %v410, %v413
  %v415 = vrot.slane %v414, 4
  %v417 = vshll.u32 %v65, 16
  %v419 = vrot.slane %v417, 5
  %v420 = vsel %vm84, %v415, %v419
  %s421 = scalar_lea.vmem %s1, 128
  %v422 = vld [vmem:[%s421] sm:$0xff]
  %v423 = vld [vmem:[%s421 + $0x8] sm:$0xff]
  %v424 = vld [vmem:[%s421 + $0x10] sm:$0xff]
  %v425 = vld [vmem:[%s421 + $0x18] sm:$0xff]
  %v426 = vld [vmem:[%s421 + $0x20] sm:$0xff]
  %v427 = vld [vmem:[%s421 + $0x28] sm:$0xff]
  %v428 = vld [vmem:[%s421 + $0x30] sm:$0xff]
  %v429 = vld [vmem:[%s421 + $0x38] sm:$0xff]
  %v430 = vld [vmem:[%s421 + $0x40] sm:$0xff]
  %v431 = vld [vmem:[%s421 + $0x48] sm:$0xff]
  %v432 = vld [vmem:[%s421 + $0x50] sm:$0xff]
  %v433 = vld [vmem:[%s421 + $0x58] sm:$0xff]
  %v434 = vld [vmem:[%s421 + $0x60] sm:$0xff]
  %v435 = vld [vmem:[%s421 + $0x68] sm:$0xff]
  %v436 = vld [vmem:[%s421 + $0x70] sm:$0xff]
  %v437 = vld [vmem:[%s421 + $0x78] sm:$0xff]
  %v438 = vunpack.c.l.b16 %v98
  %v439 = vunpack.c.l.b16 %v112
  %v440 = vunpack.c.l.b16 %v126
  %v441 = vunpack.c.l.b16 %v140
  %v442 = vunpack.c.l.b16 %v154
  %v443 = vunpack.c.l.b16 %v168
  %v444 = vunpack.c.l.b16 %v182
  %v445 = vunpack.c.l.b16 %v196
  %v446 = vunpack.c.l.b16 %v210
  %v447 = vunpack.c.l.b16 %v224
  %v448 = vunpack.c.l.b16 %v238
  %v449 = vunpack.c.l.b16 %v252
  %v450 = vunpack.c.l.b16 %v266
  %v451 = vunpack.c.l.b16 %v280
  %v452 = vunpack.c.l.b16 %v294
  %v453 = vunpack.c.l.b16 %v308
  %v454 = vunpack.c.l.b16 %v322
  %v455 = vunpack.c.l.b16 %v336
  %v456 = vunpack.c.l.b16 %v350
  %v457 = vunpack.c.l.b16 %v364
  %v458 = vunpack.c.l.b16 %v378
  %v459 = vunpack.c.l.b16 %v392
  %v460 = vunpack.c.l.b16 %v406
  %v461 = vunpack.c.l.b16 %v420
  %v462 = vpack.c.b16 %v439, %v438
  %v463 = vpack.c.b16 %v441, %v440
  %v464 = vpack.c.b16 %v443, %v442
  %v465 = vpack.c.b16 %v445, %v444
  %v466 = vpack.c.b16 %v447, %v446
  %v467 = vpack.c.b16 %v449, %v448
  %v468 = vpack.c.b16 %v451, %v450
  %v469 = vpack.c.b16 %v453, %v452
  %v470 = vpack.c.b16 %v455, %v454
  %v471 = vpack.c.b16 %v457, %v456
  %v472 = vpack.c.b16 %v459, %v458
  %v473 = vpack.c.b16 %v461, %v460
  %v502 = vunpack.c.l.b16 %v422
  %v503 = vunpack.c.h.b16 %v422
  %v504 = vunpack.c.l.b16 %v423
  %v505 = vunpack.c.h.b16 %v423
  %v506 = vunpack.c.l.b16 %v424
  %v507 = vunpack.c.h.b16 %v424
  %v508 = vunpack.c.l.b16 %v425
  %v509 = vunpack.c.h.b16 %v425
  %v510 = vunpack.c.l.b16 %v426
  %v511 = vunpack.c.h.b16 %v426
  %v512 = vunpack.c.l.b16 %v427
  %v513 = vunpack.c.h.b16 %v427
  %v514 = vunpack.c.l.b16 %v428
  %v515 = vunpack.c.h.b16 %v428
  %v516 = vunpack.c.l.b16 %v429
  %v517 = vunpack.c.h.b16 %v429
  %v518 = vunpack.c.l.b16 %v430
  %v519 = vunpack.c.h.b16 %v430
  %v520 = vunpack.c.l.b16 %v431
  %v521 = vunpack.c.h.b16 %v431
  %v522 = vunpack.c.l.b16 %v432
  %v523 = vunpack.c.h.b16 %v432
  %v524 = vunpack.c.l.b16 %v433
  %v525 = vunpack.c.h.b16 %v433
  %v526 = vunpack.c.l.b16 %v434
  %v527 = vunpack.c.h.b16 %v434
  %v528 = vunpack.c.l.b16 %v435
  %v529 = vunpack.c.h.b16 %v435
  %v530 = vunpack.c.l.b16 %v436
  %v531 = vunpack.c.h.b16 %v436
  %v532 = vunpack.c.l.b16 %v437
  %v533 = vunpack.c.h.b16 %v437
  %v534 = vpack.c.b16 %v504, %v502
  %v535 = vpack.c.b16 %v505, %v503
  %v536 = vpack.c.b16 %v508, %v506
  %v537 = vpack.c.b16 %v509, %v507
  %v538 = vpack.c.b16 %v512, %v510
  %v539 = vpack.c.b16 %v513, %v511
  %v540 = vpack.c.b16 %v516, %v514
  %v541 = vpack.c.b16 %v517, %v515
  %v542 = vpack.c.b16 %v520, %v518
  %v543 = vpack.c.b16 %v521, %v519
  %v544 = vpack.c.b16 %v524, %v522
  %v545 = vpack.c.b16 %v525, %v523
  %v546 = vpack.c.b16 %v528, %v526
  %v547 = vpack.c.b16 %v529, %v527
  %v548 = vpack.c.b16 %v532, %v530
  %v549 = vpack.c.b16 %v533, %v531
  %566 = vmatprep.subr.bf16.mxu0 %v535
  %567 = vmatpush1.bf16.msra.mxu0 %v534
  %568 = vmatprep.subr.bf16.mxu0 %v537
  %569 = vmatpush1.bf16.msra.mxu0 %v536
  %570 = vmatprep.subr.bf16.mxu0 %v539
  %571 = vmatpush1.bf16.msra.mxu0 %v538
  %572 = vmatprep.subr.bf16.mxu0 %v541
  %573 = vmatpush1.bf16.msra.mxu0 %v540
  %574 = vmatprep.subr.bf16.mxu0 %v543
  %575 = vmatpush1.bf16.msra.mxu0 %v542
  %576 = vmatprep.subr.bf16.mxu0 %v545
  %577 = vmatpush1.bf16.msra.mxu0 %v544
  %578 = vmatprep.subr.bf16.mxu0 %v547
  %579 = vmatpush1.bf16.msra.mxu0 %v546
  %580 = vmatprep.subr.bf16.mxu0 %v549
  %581 = vmatpush1.bf16.msra.mxu0 %v548
  %582 = vmatprep.subr.bf16.mxu0 0
  %583 = vmatpush1.bf16.msra.mxu0 0
  %584 = vmatprep.subr.bf16.mxu0 0
  %585 = vmatpush1.bf16.msra.mxu0 0
  %586 = vmatprep.subr.bf16.mxu0 0
  %587 = vmatpush1.bf16.msra.mxu0 0
  %588 = vmatprep.subr.bf16.mxu0 0
  %589 = vmatpush1.bf16.msra.mxu0 0
  %590 = vmatprep.subr.bf16.mxu0 0
  %591 = vmatpush1.bf16.msra.mxu0 0
  %592 = vmatprep.subr.bf16.mxu0 0
  %593 = vmatpush1.bf16.msra.mxu0 0
  %594 = vmatprep.subr.bf16.mxu0 0
  %595 = vmatpush1.bf16.msra.mxu0 0
  %596 = vmatprep.subr.bf16.mxu0 0
  %597 = vmatpush1.bf16.msra.mxu0 0
  %598 = vmatprep.mubr.bf16.mxu0 0
  %599 = vmatmul.mubr.bf16.gmra.mrb[0].mxu0 %v462
  %v600 = vpop.f32.mrb[0].mxu0
  %v601 = vadd.f32 0.0, %v600
  %v602 = vpop.f32.mrb[0].mxu0
  %v603 = vadd.f32 0.0, %v602
  %v604 = vpop.f32.mrb[0].mxu0
  %v605 = vadd.f32 0.0, %v604
  %v606 = vpop.f32.mrb[0].mxu0
  %v607 = vadd.f32 0.0, %v606
  %608 = vmatprep.mubr.bf16.mxu0 0
  %609 = vmatmul.mubr.bf16.gmra.mrb[0].mxu0 %v463
  %v610 = vpop.f32.mrb[0].mxu0
  %v611 = vadd.f32 0.0, %v610
  %v612 = vpop.f32.mrb[0].mxu0
  %v613 = vadd.f32 0.0, %v612
  %v614 = vpop.f32.mrb[0].mxu0
  %v615 = vadd.f32 0.0, %v614
  %v616 = vpop.f32.mrb[0].mxu0
  %v617 = vadd.f32 0.0, %v616
  %618 = vmatprep.mubr.bf16.mxu0 0
  %619 = vmatmul.mubr.bf16.gmra.mrb[0].mxu0 %v464
  %v620 = vpop.f32.mrb[0].mxu0
  %v621 = vadd.f32 0.0, %v620
  %v622 = vpop.f32.mrb[0].mxu0
  %v623 = vadd.f32 0.0, %v622
  %v624 = vpop.f32.mrb[0].mxu0
  %v625 = vadd.f32 0.0, %v624
  %v626 = vpop.f32.mrb[0].mxu0
  %v627 = vadd.f32 0.0, %v626
  %628 = vmatprep.mubr.bf16.mxu0 0
  %629 = vmatmul.mubr.bf16.gmra.mrb[0].mxu0 %v465
  %v630 = vpop.f32.mrb[0].mxu0
  %v631 = vadd.f32 0.0, %v630
  %v632 = vpop.f32.mrb[0].mxu0
  %v633 = vadd.f32 0.0, %v632
  %v634 = vpop.f32.mrb[0].mxu0
  %v635 = vadd.f32 0.0, %v634
  %v636 = vpop.f32.mrb[0].mxu0
  %v637 = vadd.f32 0.0, %v636
  %638 = vmatprep.mubr.bf16.mxu0 0
  %639 = vmatmul.mubr.bf16.gmra.mrb[0].mxu0 %v466
  %v640 = vpop.f32.mrb[0].mxu0
  %v641 = vadd.f32 0.0, %v640
  %v642 = vpop.f32.mrb[0].mxu0
  %v643 = vadd.f32 0.0, %v642
  %v644 = vpop.f32.mrb[0].mxu0
  %v645 = vadd.f32 0.0, %v644
  %v646 = vpop.f32.mrb[0].mxu0
  %v647 = vadd.f32 0.0, %v646
  %648 = vmatprep.mubr.bf16.mxu0 0
  %649 = vmatmul.mubr.bf16.gmra.mrb[0].mxu0 %v467
  %v650 = vpop.f32.mrb[0].mxu0
  %v651 = vadd.f32 0.0, %v650
  %v652 = vpop.f32.mrb[0].mxu0
  %v653 = vadd.f32 0.0, %v652
  %v654 = vpop.f32.mrb[0].mxu0
  %v655 = vadd.f32 0.0, %v654
  %v656 = vpop.f32.mrb[0].mxu0
  %v657 = vadd.f32 0.0, %v656
  %658 = vmatprep.mubr.bf16.mxu0 0
  %659 = vmatmul.mubr.bf16.gmra.mrb[0].mxu0 %v468
  %v660 = vpop.f32.mrb[0].mxu0
  %v661 = vadd.f32 0.0, %v660
  %v662 = vpop.f32.mrb[0].mxu0
  %v663 = vadd.f32 0.0, %v662
  %v664 = vpop.f32.mrb[0].mxu0
  %v665 = vadd.f32 0.0, %v664
  %v666 = vpop.f32.mrb[0].mxu0
  %v667 = vadd.f32 0.0, %v666
  %668 = vmatprep.mubr.bf16.mxu0 0
  %669 = vmatmul.mubr.bf16.gmra.mrb[0].mxu0 %v469
  %v670 = vpop.f32.mrb[0].mxu0
  %v671 = vadd.f32 0.0, %v670
  %v672 = vpop.f32.mrb[0].mxu0
  %v673 = vadd.f32 0.0, %v672
  %v674 = vpop.f32.mrb[0].mxu0
  %v675 = vadd.f32 0.0, %v674
  %v676 = vpop.f32.mrb[0].mxu0
  %v677 = vadd.f32 0.0, %v676
  %678 = vmatprep.mubr.bf16.mxu0 0
  %679 = vmatmul.mubr.bf16.gmra.mrb[0].mxu0 %v470
  %v680 = vpop.f32.mrb[0].mxu0
  %v681 = vadd.f32 0.0, %v680
  %v682 = vpop.f32.mrb[0].mxu0
  %v683 = vadd.f32 0.0, %v682
  %v684 = vpop.f32.mrb[0].mxu0
  %v685 = vadd.f32 0.0, %v684
  %v686 = vpop.f32.mrb[0].mxu0
  %v687 = vadd.f32 0.0, %v686
  %688 = vmatprep.mubr.bf16.mxu0 0
  %689 = vmatmul.mubr.bf16.gmra.mrb[0].mxu0 %v471
  %v690 = vpop.f32.mrb[0].mxu0
  %v691 = vadd.f32 0.0, %v690
  %v692 = vpop.f32.mrb[0].mxu0
  %v693 = vadd.f32 0.0, %v692
  %v694 = vpop.f32.mrb[0].mxu0
  %v695 = vadd.f32 0.0, %v694
  %v696 = vpop.f32.mrb[0].mxu0
  %v697 = vadd.f32 0.0, %v696
  %698 = vmatprep.mubr.bf16.mxu0 0
  %699 = vmatmul.mubr.bf16.gmra.mrb[0].mxu0 %v472
  %v700 = vpop.f32.mrb[0].mxu0
  %v701 = vadd.f32 0.0, %v700
  %v702 = vpop.f32.mrb[0].mxu0
  %v703 = vadd.f32 0.0, %v702
  %v704 = vpop.f32.mrb[0].mxu0
  %v705 = vadd.f32 0.0, %v704
  %v706 = vpop.f32.mrb[0].mxu0
  %v707 = vadd.f32 0.0, %v706
  %708 = vmatprep.mubr.bf16.mxu0 0
  %709 = vmatmul.mubr.bf16.gmra.mrb[0].mxu0 %v473
  %v710 = vpop.f32.mrb[0].mxu0
  %v711 = vadd.f32 0.0, %v710
  %v712 = vpop.f32.mrb[0].mxu0
  %v713 = vadd.f32 0.0, %v712
  %v714 = vpop.f32.mrb[0].mxu0
  %v715 = vadd.f32 0.0, %v714
  %v716 = vpop.f32.mrb[0].mxu0
  %v717 = vadd.f32 0.0, %v716
  %718 = vdwg.mxu0
  %v743 = vunpack.c.l.b16 %v18
  %v744 = vunpack.c.l.b16 %v20
  %v745 = vunpack.c.l.b16 %v22
  %v746 = vunpack.c.l.b16 %v24
  %v747 = vunpack.c.l.b16 %v26
  %v748 = vunpack.c.l.b16 %v28
  %v749 = vunpack.c.l.b16 %v30
  %v750 = vunpack.c.l.b16 %v32
  %v751 = vunpack.c.l.b16 %v34
  %v752 = vunpack.c.l.b16 %v36
  %v753 = vunpack.c.l.b16 %v38
  %v754 = vunpack.c.l.b16 %v40
  %v755 = vunpack.c.l.b16 %v42
  %v756 = vunpack.c.l.b16 %v44
  %v757 = vunpack.c.l.b16 %v46
  %v758 = vunpack.c.l.b16 %v48
  %v759 = vunpack.c.l.b16 %v50
  %v760 = vunpack.c.l.b16 %v52
  %v761 = vunpack.c.l.b16 %v54
  %v762 = vunpack.c.l.b16 %v56
  %v763 = vunpack.c.l.b16 %v58
  %v764 = vunpack.c.l.b16 %v60
  %v765 = vunpack.c.l.b16 %v62
  %v766 = vunpack.c.l.b16 %v64
  %v767 = vpack.c.b16 %v744, %v743
  %v768 = vpack.c.b16 %v746, %v745
  %v769 = vpack.c.b16 %v748, %v747
  %v770 = vpack.c.b16 %v750, %v749
  %v771 = vpack.c.b16 %v752, %v751
  %v772 = vpack.c.b16 %v754, %v753
  %v773 = vpack.c.b16 %v756, %v755
  %v774 = vpack.c.b16 %v758, %v757
  %v775 = vpack.c.b16 %v760, %v759
  %v776 = vpack.c.b16 %v762, %v761
  %v777 = vpack.c.b16 %v764, %v763
  %v778 = vpack.c.b16 %v766, %v765
  %v807 = vunpack.c.l.b16 %v66
  %v808 = vunpack.c.h.b16 %v66
  %v809 = vunpack.c.l.b16 %v67
  %v810 = vunpack.c.h.b16 %v67
  %v811 = vunpack.c.l.b16 %v68
  %v812 = vunpack.c.h.b16 %v68
  %v813 = vunpack.c.l.b16 %v69
  %v814 = vunpack.c.h.b16 %v69
  %v815 = vunpack.c.l.b16 %v70
  %v816 = vunpack.c.h.b16 %v70
  %v817 = vunpack.c.l.b16 %v71
  %v818 = vunpack.c.h.b16 %v71
  %v819 = vunpack.c.l.b16 %v72
  %v820 = vunpack.c.h.b16 %v72
  %v821 = vunpack.c.l.b16 %v73
  %v822 = vunpack.c.h.b16 %v73
  %v823 = vunpack.c.l.b16 %v74
  %v824 = vunpack.c.h.b16 %v74
  %v825 = vunpack.c.l.b16 %v75
  %v826 = vunpack.c.h.b16 %v75
  %v827 = vunpack.c.l.b16 %v76
  %v828 = vunpack.c.h.b16 %v76
  %v829 = vunpack.c.l.b16 %v77
  %v830 = vunpack.c.h.b16 %v77
  %v831 = vunpack.c.l.b16 %v78
  %v832 = vunpack.c.h.b16 %v78
  %v833 = vunpack.c.l.b16 %v79
  %v834 = vunpack.c.h.b16 %v79
  %v835 = vunpack.c.l.b16 %v80
  %v836 = vunpack.c.h.b16 %v80
  %v837 = vunpack.c.l.b16 %v81
  %v838 = vunpack.c.h.b16 %v81
  %v839 = vpack.c.b16 %v809, %v807
  %v840 = vpack.c.b16 %v810, %v808
  %v841 = vpack.c.b16 %v813, %v811
  %v842 = vpack.c.b16 %v814, %v812
  %v843 = vpack.c.b16 %v817, %v815
  %v844 = vpack.c.b16 %v818, %v816
  %v845 = vpack.c.b16 %v821, %v819
  %v846 = vpack.c.b16 %v822, %v820
  %v847 = vpack.c.b16 %v825, %v823
  %v848 = vpack.c.b16 %v826, %v824
  %v849 = vpack.c.b16 %v829, %v827
  %v850 = vpack.c.b16 %v830, %v828
  %v851 = vpack.c.b16 %v833, %v831
  %v852 = vpack.c.b16 %v834, %v832
  %v853 = vpack.c.b16 %v837, %v835
  %v854 = vpack.c.b16 %v838, %v836
  %871 = vmatprep.subr.bf16.mxu0 %v840
  %872 = vmatpush1.bf16.msra.mxu0 %v839
  %873 = vmatprep.subr.bf16.mxu0 %v842
  %874 = vmatpush1.bf16.msra.mxu0 %v841
  %875 = vmatprep.subr.bf16.mxu0 %v844
  %876 = vmatpush1.bf16.msra.mxu0 %v843
  %877 = vmatprep.subr.bf16.mxu0 %v846
  %878 = vmatpush1.bf16.msra.mxu0 %v845
  %879 = vmatprep.subr.bf16.mxu0 %v848
  %880 = vmatpush1.bf16.msra.mxu0 %v847
  %881 = vmatprep.subr.bf16.mxu0 %v850
  %882 = vmatpush1.bf16.msra.mxu0 %v849
  %883 = vmatprep.subr.bf16.mxu0 %v852
  %884 = vmatpush1.bf16.msra.mxu0 %v851
  %885 = vmatprep.subr.bf16.mxu0 %v854
  %886 = vmatpush1.bf16.msra.mxu0 %v853
  %887 = vmatprep.subr.bf16.mxu0 0
  %888 = vmatpush1.bf16.msra.mxu0 0
  %889 = vmatprep.subr.bf16.mxu0 0
  %890 = vmatpush1.bf16.msra.mxu0 0
  %891 = vmatprep.subr.bf16.mxu0 0
  %892 = vmatpush1.bf16.msra.mxu0 0
  %893 = vmatprep.subr.bf16.mxu0 0
  %894 = vmatpush1.bf16.msra.mxu0 0
  %895 = vmatprep.subr.bf16.mxu0 0
  %896 = vmatpush1.bf16.msra.mxu0 0
  %897 = vmatprep.subr.bf16.mxu0 0
  %898 = vmatpush1.bf16.msra.mxu0 0
  %899 = vmatprep.subr.bf16.mxu0 0
  %900 = vmatpush1.bf16.msra.mxu0 0
  %901 = vmatprep.subr.bf16.mxu0 0
  %902 = vmatpush1.bf16.msra.mxu0 0
  %903 = vmatprep.mubr.bf16.mxu0 0
  %904 = vmatmul.mubr.bf16.gmra.mrb[0].mxu0 %v767
  %v905 = vpop.f32.mrb[0].mxu0
  %v906 = vadd.f32 %v601, %v905
  %v907 = vpop.f32.mrb[0].mxu0
  %v908 = vadd.f32 %v603, %v907
  %v909 = vpop.f32.mrb[0].mxu0
  %v910 = vadd.f32 %v605, %v909
  %v911 = vpop.f32.mrb[0].mxu0
  %v912 = vadd.f32 %v607, %v911
  %913 = vmatprep.mubr.bf16.mxu0 0
  %914 = vmatmul.mubr.bf16.gmra.mrb[0].mxu0 %v768
  %v915 = vpop.f32.mrb[0].mxu0
  %v916 = vadd.f32 %v611, %v915
  %v917 = vpop.f32.mrb[0].mxu0
  %v918 = vadd.f32 %v613, %v917
  %v919 = vpop.f32.mrb[0].mxu0
  %v920 = vadd.f32 %v615, %v919
  %v921 = vpop.f32.mrb[0].mxu0
  %v922 = vadd.f32 %v617, %v921
  %923 = vmatprep.mubr.bf16.mxu0 0
  %924 = vmatmul.mubr.bf16.gmra.mrb[0].mxu0 %v769
  %v925 = vpop.f32.mrb[0].mxu0
  %v926 = vadd.f32 %v621, %v925
  %v927 = vpop.f32.mrb[0].mxu0
  %v928 = vadd.f32 %v623, %v927
  %v929 = vpop.f32.mrb[0].mxu0
  %v930 = vadd.f32 %v625, %v929
  %v931 = vpop.f32.mrb[0].mxu0
  %v932 = vadd.f32 %v627, %v931
  %933 = vmatprep.mubr.bf16.mxu0 0
  %934 = vmatmul.mubr.bf16.gmra.mrb[0].mxu0 %v770
  %v935 = vpop.f32.mrb[0].mxu0
  %v936 = vadd.f32 %v631, %v935
  %v937 = vpop.f32.mrb[0].mxu0
  %v938 = vadd.f32 %v633, %v937
  %v939 = vpop.f32.mrb[0].mxu0
  %v940 = vadd.f32 %v635, %v939
  %v941 = vpop.f32.mrb[0].mxu0
  %v942 = vadd.f32 %v637, %v941
  %943 = vmatprep.mubr.bf16.mxu0 0
  %944 = vmatmul.mubr.bf16.gmra.mrb[0].mxu0 %v771
  %v945 = vpop.f32.mrb[0].mxu0
  %v946 = vadd.f32 %v641, %v945
  %v947 = vpop.f32.mrb[0].mxu0
  %v948 = vadd.f32 %v643, %v947
  %v949 = vpop.f32.mrb[0].mxu0
  %v950 = vadd.f32 %v645, %v949
  %v951 = vpop.f32.mrb[0].mxu0
  %v952 = vadd.f32 %v647, %v951
  %953 = vmatprep.mubr.bf16.mxu0 0
  %954 = vmatmul.mubr.bf16.gmra.mrb[0].mxu0 %v772
  %v955 = vpop.f32.mrb[0].mxu0
  %v956 = vadd.f32 %v651, %v955
  %v957 = vpop.f32.mrb[0].mxu0
  %v958 = vadd.f32 %v653, %v957
  %v959 = vpop.f32.mrb[0].mxu0
  %v960 = vadd.f32 %v655, %v959
  %v961 = vpop.f32.mrb[0].mxu0
  %v962 = vadd.f32 %v657, %v961
  %963 = vmatprep.mubr.bf16.mxu0 0
  %964 = vmatmul.mubr.bf16.gmra.mrb[0].mxu0 %v773
  %v965 = vpop.f32.mrb[0].mxu0
  %v966 = vadd.f32 %v661, %v965
  %v967 = vpop.f32.mrb[0].mxu0
  %v968 = vadd.f32 %v663, %v967
  %v969 = vpop.f32.mrb[0].mxu0
  %v970 = vadd.f32 %v665, %v969
  %v971 = vpop.f32.mrb[0].mxu0
  %v972 = vadd.f32 %v667, %v971
  %973 = vmatprep.mubr.bf16.mxu0 0
  %974 = vmatmul.mubr.bf16.gmra.mrb[0].mxu0 %v774
  %v975 = vpop.f32.mrb[0].mxu0
  %v976 = vadd.f32 %v671, %v975
  %v977 = vpop.f32.mrb[0].mxu0
  %v978 = vadd.f32 %v673, %v977
  %v979 = vpop.f32.mrb[0].mxu0
  %v980 = vadd.f32 %v675, %v979
  %v981 = vpop.f32.mrb[0].mxu0
  %v982 = vadd.f32 %v677, %v981
  %983 = vmatprep.mubr.bf16.mxu0 0
  %984 = vmatmul.mubr.bf16.gmra.mrb[0].mxu0 %v775
  %v985 = vpop.f32.mrb[0].mxu0
  %v986 = vadd.f32 %v681, %v985
  %v987 = vpop.f32.mrb[0].mxu0
  %v988 = vadd.f32 %v683, %v987
  %v989 = vpop.f32.mrb[0].mxu0
  %v990 = vadd.f32 %v685, %v989
  %v991 = vpop.f32.mrb[0].mxu0
  %v992 = vadd.f32 %v687, %v991
  %993 = vmatprep.mubr.bf16.mxu0 0
  %994 = vmatmul.mubr.bf16.gmra.mrb[0].mxu0 %v776
  %v995 = vpop.f32.mrb[0].mxu0
  %v996 = vadd.f32 %v691, %v995
  %v997 = vpop.f32.mrb[0].mxu0
  %v998 = vadd.f32 %v693, %v997
  %v999 = vpop.f32.mrb[0].mxu0
  %v1000 = vadd.f32 %v695, %v999
  %v1001 = vpop.f32.mrb[0].mxu0
  %v1002 = vadd.f32 %v697, %v1001
  %1003 = vmatprep.mubr.bf16.mxu0 0
  %1004 = vmatmul.mubr.bf16.gmra.mrb[0].mxu0 %v777
  %v1005 = vpop.f32.mrb[0].mxu0
  %v1006 = vadd.f32 %v701, %v1005
  %v1007 = vpop.f32.mrb[0].mxu0
  %v1008 = vadd.f32 %v703, %v1007
  %v1009 = vpop.f32.mrb[0].mxu0
  %v1010 = vadd.f32 %v705, %v1009
  %v1011 = vpop.f32.mrb[0].mxu0
  %v1012 = vadd.f32 %v707, %v1011
  %1013 = vmatprep.mubr.bf16.mxu0 0
  %1014 = vmatmul.mubr.bf16.gmra.mrb[0].mxu0 %v778
  %v1015 = vpop.f32.mrb[0].mxu0
  %v1016 = vadd.f32 %v711, %v1015
  %v1017 = vpop.f32.mrb[0].mxu0
  %v1018 = vadd.f32 %v713, %v1017
  %v1019 = vpop.f32.mrb[0].mxu0
  %v1020 = vadd.f32 %v715, %v1019
  %v1021 = vpop.f32.mrb[0].mxu0
  %v1022 = vadd.f32 %v717, %v1021
  %1023 = vdwg.mxu0
  %vm1048 = vcmask 1042432
  %vm1049 = vcmask 1046532
  %vm1050 = vmor %vm1048, %vm1049
  %v1051 = vrot.slane %v18, 5
  %v1052 = vrot.slane %v1051, 4
  %v1053 = vrot.slane %v19, 5
  %v1054 = vsel %vm1050, %v1052, %v1053
  %v1055 = vrot.slane %v20, 5
  %v1056 = vrot.slane %v1055, 4
  %v1057 = vrot.slane %v21, 5
  %v1058 = vsel %vm1050, %v1056, %v1057
  %v1059 = vrot.slane %v22, 5
  %v1060 = vrot.slane %v1059, 4
  %v1061 = vrot.slane %v23, 5
  %v1062 = vsel %vm1050, %v1060, %v1061
  %v1063 = vrot.slane %v24, 5
  %v1064 = vrot.slane %v1063, 4
  %v1065 = vrot.slane %v25, 5
  %v1066 = vsel %vm1050, %v1064, %v1065
  %v1067 = vrot.slane %v26, 5
  %v1068 = vrot.slane %v1067, 4
  %v1069 = vrot.slane %v27, 5
  %v1070 = vsel %vm1050, %v1068, %v1069
  %v1071 = vrot.slane %v28, 5
  %v1072 = vrot.slane %v1071, 4
  %v1073 = vrot.slane %v29, 5
  %v1074 = vsel %vm1050, %v1072, %v1073
  %v1075 = vrot.slane %v30, 5
  %v1076 = vrot.slane %v1075, 4
  %v1077 = vrot.slane %v31, 5
  %v1078 = vsel %vm1050, %v1076, %v1077
  %v1079 = vrot.slane %v32, 5
  %v1080 = vrot.slane %v1079, 4
  %v1081 = vrot.slane %v33, 5
  %v1082 = vsel %vm1050, %v1080, %v1081
  %v1083 = vrot.slane %v34, 5
  %v1084 = vrot.slane %v1083, 4
  %v1085 = vrot.slane %v35, 5
  %v1086 = vsel %vm1050, %v1084, %v1085
  %v1087 = vrot.slane %v36, 5
  %v1088 = vrot.slane %v1087, 4
  %v1089 = vrot.slane %v37, 5
  %v1090 = vsel %vm1050, %v1088, %v1089
  %v1091 = vrot.slane %v38, 5
  %v1092 = vrot.slane %v1091, 4
  %v1093 = vrot.slane %v39, 5
  %v1094 = vsel %vm1050, %v1092, %v1093
  %v1095 = vrot.slane %v40, 5
  %v1096 = vrot.slane %v1095, 4
  %v1097 = vrot.slane %v41, 5
  %v1098 = vsel %vm1050, %v1096, %v1097
  %v1099 = vrot.slane %v42, 5
  %v1100 = vrot.slane %v1099, 4
  %v1101 = vrot.slane %v43, 5
  %v1102 = vsel %vm1050, %v1100, %v1101
  %v1103 = vrot.slane %v44, 5
  %v1104 = vrot.slane %v1103, 4
  %v1105 = vrot.slane %v45, 5
  %v1106 = vsel %vm1050, %v1104, %v1105
  %v1107 = vrot.slane %v46, 5
  %v1108 = vrot.slane %v1107, 4
  %v1109 = vrot.slane %v47, 5
  %v1110 = vsel %vm1050, %v1108, %v1109
  %v1111 = vrot.slane %v48, 5
  %v1112 = vrot.slane %v1111, 4
  %v1113 = vrot.slane %v49, 5
  %v1114 = vsel %vm1050, %v1112, %v1113
  %v1115 = vrot.slane %v50, 5
  %v1116 = vrot.slane %v1115, 4
  %v1117 = vrot.slane %v51, 5
  %v1118 = vsel %vm1050, %v1116, %v1117
  %v1119 = vrot.slane %v52, 5
  %v1120 = vrot.slane %v1119, 4
  %v1121 = vrot.slane %v53, 5
  %v1122 = vsel %vm1050, %v1120, %v1121
  %v1123 = vrot.slane %v54, 5
  %v1124 = vrot.slane %v1123, 4
  %v1125 = vrot.slane %v55, 5
  %v1126 = vsel %vm1050, %v1124, %v1125
  %v1127 = vrot.slane %v56, 5
  %v1128 = vrot.slane %v1127, 4
  %v1129 = vrot.slane %v57, 5
  %v1130 = vsel %vm1050, %v1128, %v1129
  %v1131 = vrot.slane %v58, 5
  %v1132 = vrot.slane %v1131, 4
  %v1133 = vrot.slane %v59, 5
  %v1134 = vsel %vm1050, %v1132, %v1133
  %v1135 = vrot.slane %v60, 5
  %v1136 = vrot.slane %v1135, 4
  %v1137 = vrot.slane %v61, 5
  %v1138 = vsel %vm1050, %v1136, %v1137
  %v1139 = vrot.slane %v62, 5
  %v1140 = vrot.slane %v1139, 4
  %v1141 = vrot.slane %v63, 5
  %v1142 = vsel %vm1050, %v1140, %v1141
  %v1143 = vrot.slane %v64, 5
  %v1144 = vrot.slane %v1143, 4
  %v1145 = vrot.slane %v65, 5
  %v1146 = vsel %vm1050, %v1144, %v1145
  %s1147 = scalar_lea.vmem %s1, 256
  %v1148 = vld [vmem:[%s1147] sm:$0xff]
  %v1149 = vld [vmem:[%s1147 + $0x8] sm:$0xff]
  %v1150 = vld [vmem:[%s1147 + $0x10] sm:$0xff]
  %v1151 = vld [vmem:[%s1147 + $0x18] sm:$0xff]
  %v1152 = vld [vmem:[%s1147 + $0x20] sm:$0xff]
  %v1153 = vld [vmem:[%s1147 + $0x28] sm:$0xff]
  %v1154 = vld [vmem:[%s1147 + $0x30] sm:$0xff]
  %v1155 = vld [vmem:[%s1147 + $0x38] sm:$0xff]
  %v1156 = vld [vmem:[%s1147 + $0x40] sm:$0xff]
  %v1157 = vld [vmem:[%s1147 + $0x48] sm:$0xff]
  %v1158 = vld [vmem:[%s1147 + $0x50] sm:$0xff]
  %v1159 = vld [vmem:[%s1147 + $0x58] sm:$0xff]
  %v1160 = vld [vmem:[%s1147 + $0x60] sm:$0xff]
  %v1161 = vld [vmem:[%s1147 + $0x68] sm:$0xff]
  %v1162 = vld [vmem:[%s1147 + $0x70] sm:$0xff]
  %v1163 = vld [vmem:[%s1147 + $0x78] sm:$0xff]
  %v1164 = vunpack.c.l.b16 %v1054
  %v1165 = vunpack.c.l.b16 %v1058
  %v1166 = vunpack.c.l.b16 %v1062
  %v1167 = vunpack.c.l.b16 %v1066
  %v1168 = vunpack.c.l.b16 %v1070
  %v1169 = vunpack.c.l.b16 %v1074
  %v1170 = vunpack.c.l.b16 %v1078
  %v1171 = vunpack.c.l.b16 %v1082
  %v1172 = vunpack.c.l.b16 %v1086
  %v1173 = vunpack.c.l.b16 %v1090
  %v1174 = vunpack.c.l.b16 %v1094
  %v1175 = vunpack.c.l.b16 %v1098
  %v1176 = vunpack.c.l.b16 %v1102
  %v1177 = vunpack.c.l.b16 %v1106
  %v1178 = vunpack.c.l.b16 %v1110
  %v1179 = vunpack.c.l.b16 %v1114
  %v1180 = vunpack.c.l.b16 %v1118
  %v1181 = vunpack.c.l.b16 %v1122
  %v1182 = vunpack.c.l.b16 %v1126
  %v1183 = vunpack.c.l.b16 %v1130
  %v1184 = vunpack.c.l.b16 %v1134
  %v1185 = vunpack.c.l.b16 %v1138
  %v1186 = vunpack.c.l.b16 %v1142
  %v1187 = vunpack.c.l.b16 %v1146
  %v1188 = vpack.c.b16 %v1165, %v1164
  %v1189 = vpack.c.b16 %v1167, %v1166
  %v1190 = vpack.c.b16 %v1169, %v1168
  %v1191 = vpack.c.b16 %v1171, %v1170
  %v1192 = vpack.c.b16 %v1173, %v1172
  %v1193 = vpack.c.b16 %v1175, %v1174
  %v1194 = vpack.c.b16 %v1177, %v1176
  %v1195 = vpack.c.b16 %v1179, %v1178
  %v1196 = vpack.c.b16 %v1181, %v1180
  %v1197 = vpack.c.b16 %v1183, %v1182
  %v1198 = vpack.c.b16 %v1185, %v1184
  %v1199 = vpack.c.b16 %v1187, %v1186
  %v1228 = vunpack.c.l.b16 %v1148
  %v1229 = vunpack.c.h.b16 %v1148
  %v1230 = vunpack.c.l.b16 %v1149
  %v1231 = vunpack.c.h.b16 %v1149
  %v1232 = vunpack.c.l.b16 %v1150
  %v1233 = vunpack.c.h.b16 %v1150
  %v1234 = vunpack.c.l.b16 %v1151
  %v1235 = vunpack.c.h.b16 %v1151
  %v1236 = vunpack.c.l.b16 %v1152
  %v1237 = vunpack.c.h.b16 %v1152
  %v1238 = vunpack.c.l.b16 %v1153
  %v1239 = vunpack.c.h.b16 %v1153
  %v1240 = vunpack.c.l.b16 %v1154
  %v1241 = vunpack.c.h.b16 %v1154
  %v1242 = vunpack.c.l.b16 %v1155
  %v1243 = vunpack.c.h.b16 %v1155
  %v1244 = vunpack.c.l.b16 %v1156
  %v1245 = vunpack.c.h.b16 %v1156
  %v1246 = vunpack.c.l.b16 %v1157
  %v1247 = vunpack.c.h.b16 %v1157
  %v1248 = vunpack.c.l.b16 %v1158
  %v1249 = vunpack.c.h.b16 %v1158
  %v1250 = vunpack.c.l.b16 %v1159
  %v1251 = vunpack.c.h.b16 %v1159
  %v1252 = vunpack.c.l.b16 %v1160
  %v1253 = vunpack.c.h.b16 %v1160
  %v1254 = vunpack.c.l.b16 %v1161
  %v1255 = vunpack.c.h.b16 %v1161
  %v1256 = vunpack.c.l.b16 %v1162
  %v1257 = vunpack.c.h.b16 %v1162
  %v1258 = vunpack.c.l.b16 %v1163
  %v1259 = vunpack.c.h.b16 %v1163
  %v1260 = vpack.c.b16 %v1230, %v1228
  %v1261 = vpack.c.b16 %v1231, %v1229
  %v1262 = vpack.c.b16 %v1234, %v1232
  %v1263 = vpack.c.b16 %v1235, %v1233
  %v1264 = vpack.c.b16 %v1238, %v1236
  %v1265 = vpack.c.b16 %v1239, %v1237
  %v1266 = vpack.c.b16 %v1242, %v1240
  %v1267 = vpack.c.b16 %v1243, %v1241
  %v1268 = vpack.c.b16 %v1246, %v1244
  %v1269 = vpack.c.b16 %v1247, %v1245
  %v1270 = vpack.c.b16 %v1250, %v1248
  %v1271 = vpack.c.b16 %v1251, %v1249
  %v1272 = vpack.c.b16 %v1254, %v1252
  %v1273 = vpack.c.b16 %v1255, %v1253
  %v1274 = vpack.c.b16 %v1258, %v1256
  %v1275 = vpack.c.b16 %v1259, %v1257
  %1292 = vmatprep.subr.bf16.mxu0 %v1261
  %1293 = vmatpush1.bf16.msra.mxu0 %v1260
  %1294 = vmatprep.subr.bf16.mxu0 %v1263
  %1295 = vmatpush1.bf16.msra.mxu0 %v1262
  %1296 = vmatprep.subr.bf16.mxu0 %v1265
  %1297 = vmatpush1.bf16.msra.mxu0 %v1264
  %1298 = vmatprep.subr.bf16.mxu0 %v1267
  %1299 = vmatpush1.bf16.msra.mxu0 %v1266
  %1300 = vmatprep.subr.bf16.mxu0 %v1269
  %1301 = vmatpush1.bf16.msra.mxu0 %v1268
  %1302 = vmatprep.subr.bf16.mxu0 %v1271
  %1303 = vmatpush1.bf16.msra.mxu0 %v1270
  %1304 = vmatprep.subr.bf16.mxu0 %v1273
  %1305 = vmatpush1.bf16.msra.mxu0 %v1272
  %1306 = vmatprep.subr.bf16.mxu0 %v1275
  %1307 = vmatpush1.bf16.msra.mxu0 %v1274
  %1308 = vmatprep.subr.bf16.mxu0 0
  %1309 = vmatpush1.bf16.msra.mxu0 0
  %1310 = vmatprep.subr.bf16.mxu0 0
  %1311 = vmatpush1.bf16.msra.mxu0 0
  %1312 = vmatprep.subr.bf16.mxu0 0
  %1313 = vmatpush1.bf16.msra.mxu0 0
  %1314 = vmatprep.subr.bf16.mxu0 0
  %1315 = vmatpush1.bf16.msra.mxu0 0
  %1316 = vmatprep.subr.bf16.mxu0 0
  %1317 = vmatpush1.bf16.msra.mxu0 0
  %1318 = vmatprep.subr.bf16.mxu0 0
  %1319 = vmatpush1.bf16.msra.mxu0 0
  %1320 = vmatprep.subr.bf16.mxu0 0
  %1321 = vmatpush1.bf16.msra.mxu0 0
  %1322 = vmatprep.subr.bf16.mxu0 0
  %1323 = vmatpush1.bf16.msra.mxu0 0
  %1324 = vmatprep.mubr.bf16.mxu0 0
  %1325 = vmatmul.mubr.bf16.gmra.mrb[0].mxu0 %v1188
  %v1326 = vpop.f32.mrb[0].mxu0
  %v1327 = vadd.f32 0.0, %v1326
  %v1328 = vpop.f32.mrb[0].mxu0
  %v1329 = vadd.f32 0.0, %v1328
  %v1330 = vpop.f32.mrb[0].mxu0
  %v1331 = vadd.f32 0.0, %v1330
  %v1332 = vpop.f32.mrb[0].mxu0
  %v1333 = vadd.f32 0.0, %v1332
  %1334 = vmatprep.mubr.bf16.mxu0 0
  %1335 = vmatmul.mubr.bf16.gmra.mrb[0].mxu0 %v1189
  %v1336 = vpop.f32.mrb[0].mxu0
  %v1337 = vadd.f32 0.0, %v1336
  %v1338 = vpop.f32.mrb[0].mxu0
  %v1339 = vadd.f32 0.0, %v1338
  %v1340 = vpop.f32.mrb[0].mxu0
  %v1341 = vadd.f32 0.0, %v1340
  %v1342 = vpop.f32.mrb[0].mxu0
  %v1343 = vadd.f32 0.0, %v1342
  %1344 = vmatprep.mubr.bf16.mxu0 0
  %1345 = vmatmul.mubr.bf16.gmra.mrb[0].mxu0 %v1190
  %v1346 = vpop.f32.mrb[0].mxu0
  %v1347 = vadd.f32 0.0, %v1346
  %v1348 = vpop.f32.mrb[0].mxu0
  %v1349 = vadd.f32 0.0, %v1348
  %v1350 = vpop.f32.mrb[0].mxu0
  %v1351 = vadd.f32 0.0, %v1350
  %v1352 = vpop.f32.mrb[0].mxu0
  %v1353 = vadd.f32 0.0, %v1352
  %1354 = vmatprep.mubr.bf16.mxu0 0
  %1355 = vmatmul.mubr.bf16.gmra.mrb[0].mxu0 %v1191
  %v1356 = vpop.f32.mrb[0].mxu0
  %v1357 = vadd.f32 0.0, %v1356
  %v1358 = vpop.f32.mrb[0].mxu0
  %v1359 = vadd.f32 0.0, %v1358
  %v1360 = vpop.f32.mrb[0].mxu0
  %v1361 = vadd.f32 0.0, %v1360
  %v1362 = vpop.f32.mrb[0].mxu0
  %v1363 = vadd.f32 0.0, %v1362
  %1364 = vmatprep.mubr.bf16.mxu0 0
  %1365 = vmatmul.mubr.bf16.gmra.mrb[0].mxu0 %v1192
  %v1366 = vpop.f32.mrb[0].mxu0
  %v1367 = vadd.f32 0.0, %v1366
  %v1368 = vpop.f32.mrb[0].mxu0
  %v1369 = vadd.f32 0.0, %v1368
  %v1370 = vpop.f32.mrb[0].mxu0
  %v1371 = vadd.f32 0.0, %v1370
  %v1372 = vpop.f32.mrb[0].mxu0
  %v1373 = vadd.f32 0.0, %v1372
  %1374 = vmatprep.mubr.bf16.mxu0 0
  %1375 = vmatmul.mubr.bf16.gmra.mrb[0].mxu0 %v1193
  %v1376 = vpop.f32.mrb[0].mxu0
  %v1377 = vadd.f32 0.0, %v1376
  %v1378 = vpop.f32.mrb[0].mxu0
  %v1379 = vadd.f32 0.0, %v1378
  %v1380 = vpop.f32.mrb[0].mxu0
  %v1381 = vadd.f32 0.0, %v1380
  %v1382 = vpop.f32.mrb[0].mxu0
  %v1383 = vadd.f32 0.0, %v1382
  %1384 = vmatprep.mubr.bf16.mxu0 0
  %1385 = vmatmul.mubr.bf16.gmra.mrb[0].mxu0 %v1194
  %v1386 = vpop.f32.mrb[0].mxu0
  %v1387 = vadd.f32 0.0, %v1386
  %v1388 = vpop.f32.mrb[0].mxu0
  %v1389 = vadd.f32 0.0, %v1388
  %v1390 = vpop.f32.mrb[0].mxu0
  %v1391 = vadd.f32 0.0, %v1390
  %v1392 = vpop.f32.mrb[0].mxu0
  %v1393 = vadd.f32 0.0, %v1392
  %1394 = vmatprep.mubr.bf16.mxu0 0
  %1395 = vmatmul.mubr.bf16.gmra.mrb[0].mxu0 %v1195
  %v1396 = vpop.f32.mrb[0].mxu0
  %v1397 = vadd.f32 0.0, %v1396
  %v1398 = vpop.f32.mrb[0].mxu0
  %v1399 = vadd.f32 0.0, %v1398
  %v1400 = vpop.f32.mrb[0].mxu0
  %v1401 = vadd.f32 0.0, %v1400
  %v1402 = vpop.f32.mrb[0].mxu0
  %v1403 = vadd.f32 0.0, %v1402
  %1404 = vmatprep.mubr.bf16.mxu0 0
  %1405 = vmatmul.mubr.bf16.gmra.mrb[0].mxu0 %v1196
  %v1406 = vpop.f32.mrb[0].mxu0
  %v1407 = vadd.f32 0.0, %v1406
  %v1408 = vpop.f32.mrb[0].mxu0
  %v1409 = vadd.f32 0.0, %v1408
  %v1410 = vpop.f32.mrb[0].mxu0
  %v1411 = vadd.f32 0.0, %v1410
  %v1412 = vpop.f32.mrb[0].mxu0
  %v1413 = vadd.f32 0.0, %v1412
  %1414 = vmatprep.mubr.bf16.mxu0 0
  %1415 = vmatmul.mubr.bf16.gmra.mrb[0].mxu0 %v1197
  %v1416 = vpop.f32.mrb[0].mxu0
  %v1417 = vadd.f32 0.0, %v1416
  %v1418 = vpop.f32.mrb[0].mxu0
  %v1419 = vadd.f32 0.0, %v1418
  %v1420 = vpop.f32.mrb[0].mxu0
  %v1421 = vadd.f32 0.0, %v1420
  %v1422 = vpop.f32.mrb[0].mxu0
  %v1423 = vadd.f32 0.0, %v1422
  %1424 = vmatprep.mubr.bf16.mxu0 0
  %1425 = vmatmul.mubr.bf16.gmra.mrb[0].mxu0 %v1198
  %v1426 = vpop.f32.mrb[0].mxu0
  %v1427 = vadd.f32 0.0, %v1426
  %v1428 = vpop.f32.mrb[0].mxu0
  %v1429 = vadd.f32 0.0, %v1428
  %v1430 = vpop.f32.mrb[0].mxu0
  %v1431 = vadd.f32 0.0, %v1430
  %v1432 = vpop.f32.mrb[0].mxu0
  %v1433 = vadd.f32 0.0, %v1432
  %1434 = vmatprep.mubr.bf16.mxu0 0
  %1435 = vmatmul.mubr.bf16.gmra.mrb[0].mxu0 %v1199
  %v1436 = vpop.f32.mrb[0].mxu0
  %v1437 = vadd.f32 0.0, %v1436
  %v1438 = vpop.f32.mrb[0].mxu0
  %v1439 = vadd.f32 0.0, %v1438
  %v1440 = vpop.f32.mrb[0].mxu0
  %v1441 = vadd.f32 0.0, %v1440
  %v1442 = vpop.f32.mrb[0].mxu0
  %v1443 = vadd.f32 0.0, %v1442
  %1444 = vdwg.mxu0
  %v1445 = vadd.f32 %v906, %v1327
  %v1446 = vadd.f32 %v908, %v1329
  %v1447 = vadd.f32 %v910, %v1331
  %v1448 = vadd.f32 %v912, %v1333
  %v1449 = vadd.f32 %v916, %v1337
  %v1450 = vadd.f32 %v918, %v1339
  %v1451 = vadd.f32 %v920, %v1341
  %v1452 = vadd.f32 %v922, %v1343
  %v1453 = vadd.f32 %v926, %v1347
  %v1454 = vadd.f32 %v928, %v1349
  %v1455 = vadd.f32 %v930, %v1351
  %v1456 = vadd.f32 %v932, %v1353
  %v1457 = vadd.f32 %v936, %v1357
  %v1458 = vadd.f32 %v938, %v1359
  %v1459 = vadd.f32 %v940, %v1361
  %v1460 = vadd.f32 %v942, %v1363
  %v1461 = vadd.f32 %v946, %v1367
  %v1462 = vadd.f32 %v948, %v1369
  %v1463 = vadd.f32 %v950, %v1371
  %v1464 = vadd.f32 %v952, %v1373
  %v1465 = vadd.f32 %v956, %v1377
  %v1466 = vadd.f32 %v958, %v1379
  %v1467 = vadd.f32 %v960, %v1381
  %v1468 = vadd.f32 %v962, %v1383
  %v1469 = vadd.f32 %v966, %v1387
  %v1470 = vadd.f32 %v968, %v1389
  %v1471 = vadd.f32 %v970, %v1391
  %v1472 = vadd.f32 %v972, %v1393
  %v1473 = vadd.f32 %v976, %v1397
  %v1474 = vadd.f32 %v978, %v1399
  %v1475 = vadd.f32 %v980, %v1401
  %v1476 = vadd.f32 %v982, %v1403
  %v1477 = vadd.f32 %v986, %v1407
  %v1478 = vadd.f32 %v988, %v1409
  %v1479 = vadd.f32 %v990, %v1411
  %v1480 = vadd.f32 %v992, %v1413
  %v1481 = vadd.f32 %v996, %v1417
  %v1482 = vadd.f32 %v998, %v1419
  %v1483 = vadd.f32 %v1000, %v1421
  %v1484 = vadd.f32 %v1002, %v1423
  %v1485 = vadd.f32 %v1006, %v1427
  %v1486 = vadd.f32 %v1008, %v1429
  %v1487 = vadd.f32 %v1010, %v1431
  %v1488 = vadd.f32 %v1012, %v1433
  %v1489 = vadd.f32 %v1016, %v1437
  %v1490 = vadd.f32 %v1018, %v1439
  %v1491 = vadd.f32 %v1020, %v1441
  %v1492 = vadd.f32 %v1022, %v1443
  %v1493 = vxor.u32 %v1445, 2147483648
  %v1494 = vxor.u32 %v1447, 2147483648
  %v1495 = vxor.u32 %v1449, 2147483648
  %v1496 = vxor.u32 %v1451, 2147483648
  %v1497 = vxor.u32 %v1453, 2147483648
  %v1498 = vxor.u32 %v1455, 2147483648
  %v1499 = vxor.u32 %v1457, 2147483648
  %v1500 = vxor.u32 %v1459, 2147483648
  %v1501 = vxor.u32 %v1461, 2147483648
  %v1502 = vxor.u32 %v1463, 2147483648
  %v1503 = vxor.u32 %v1465, 2147483648
  %v1504 = vxor.u32 %v1467, 2147483648
  %v1505 = vxor.u32 %v1469, 2147483648
  %v1506 = vxor.u32 %v1471, 2147483648
  %v1507 = vxor.u32 %v1473, 2147483648
  %v1508 = vxor.u32 %v1475, 2147483648
  %v1509 = vxor.u32 %v1477, 2147483648
  %v1510 = vxor.u32 %v1479, 2147483648
  %v1511 = vxor.u32 %v1481, 2147483648
  %v1512 = vxor.u32 %v1483, 2147483648
  %v1513 = vxor.u32 %v1485, 2147483648
  %v1514 = vxor.u32 %v1487, 2147483648
  %v1515 = vxor.u32 %v1489, 2147483648
  %v1516 = vxor.u32 %v1491, 2147483648
  %v1517 = vmul.f32 %v1493, 1.442695
  %v1518 = vpow.pop %v1517
  %v1519 = vmul.f32 %v1494, 1.442695
  %v1520 = vpow.pop %v1519
  %v1521 = vmul.f32 %v1495, 1.442695
  %v1522 = vpow.pop %v1521
  %v1523 = vmul.f32 %v1496, 1.442695
  %v1524 = vpow.pop %v1523
  %v1525 = vmul.f32 %v1497, 1.442695
  %v1526 = vpow.pop %v1525
  %v1527 = vmul.f32 %v1498, 1.442695
  %v1528 = vpow.pop %v1527
  %v1529 = vmul.f32 %v1499, 1.442695
  %v1530 = vpow.pop %v1529
  %v1531 = vmul.f32 %v1500, 1.442695
  %v1532 = vpow.pop %v1531
  %v1533 = vmul.f32 %v1501, 1.442695
  %v1534 = vpow.pop %v1533
  %v1535 = vmul.f32 %v1502, 1.442695
  %v1536 = vpow.pop %v1535
  %v1537 = vmul.f32 %v1503, 1.442695
  %v1538 = vpow.pop %v1537
  %v1539 = vmul.f32 %v1504, 1.442695
  %v1540 = vpow.pop %v1539
  %v1541 = vmul.f32 %v1505, 1.442695
  %v1542 = vpow.pop %v1541
  %v1543 = vmul.f32 %v1506, 1.442695
  %v1544 = vpow.pop %v1543
  %v1545 = vmul.f32 %v1507, 1.442695
  %v1546 = vpow.pop %v1545
  %v1547 = vmul.f32 %v1508, 1.442695
  %v1548 = vpow.pop %v1547
  %v1549 = vmul.f32 %v1509, 1.442695
  %v1550 = vpow.pop %v1549
  %v1551 = vmul.f32 %v1510, 1.442695
  %v1552 = vpow.pop %v1551
  %v1553 = vmul.f32 %v1511, 1.442695
  %v1554 = vpow.pop %v1553
  %v1555 = vmul.f32 %v1512, 1.442695
  %v1556 = vpow.pop %v1555
  %v1557 = vmul.f32 %v1513, 1.442695
  %v1558 = vpow.pop %v1557
  %v1559 = vmul.f32 %v1514, 1.442695
  %v1560 = vpow.pop %v1559
  %v1561 = vmul.f32 %v1515, 1.442695
  %v1562 = vpow.pop %v1561
  %v1563 = vmul.f32 %v1516, 1.442695
  %v1564 = vpow.pop %v1563
  %v1565 = vadd.f32 %v1518, 1.0
  %v1566 = vadd.f32 %v1520, 1.0
  %v1567 = vadd.f32 %v1522, 1.0
  %v1568 = vadd.f32 %v1524, 1.0
  %v1569 = vadd.f32 %v1526, 1.0
  %v1570 = vadd.f32 %v1528, 1.0
  %v1571 = vadd.f32 %v1530, 1.0
  %v1572 = vadd.f32 %v1532, 1.0
  %v1573 = vadd.f32 %v1534, 1.0
  %v1574 = vadd.f32 %v1536, 1.0
  %v1575 = vadd.f32 %v1538, 1.0
  %v1576 = vadd.f32 %v1540, 1.0
  %v1577 = vadd.f32 %v1542, 1.0
  %v1578 = vadd.f32 %v1544, 1.0
  %v1579 = vadd.f32 %v1546, 1.0
  %v1580 = vadd.f32 %v1548, 1.0
  %v1581 = vadd.f32 %v1550, 1.0
  %v1582 = vadd.f32 %v1552, 1.0
  %v1583 = vadd.f32 %v1554, 1.0
  %v1584 = vadd.f32 %v1556, 1.0
  %v1585 = vadd.f32 %v1558, 1.0
  %v1586 = vadd.f32 %v1560, 1.0
  %v1587 = vadd.f32 %v1562, 1.0
  %v1588 = vadd.f32 %v1564, 1.0
  %v1589 = vrcp.pop %v1565
  %v1590 = vmul.f32 1.0, %v1589
  %v1591 = vrcp.pop %v1566
  %v1592 = vmul.f32 1.0, %v1591
  %v1593 = vrcp.pop %v1567
  %v1594 = vmul.f32 1.0, %v1593
  %v1595 = vrcp.pop %v1568
  %v1596 = vmul.f32 1.0, %v1595
  %v1597 = vrcp.pop %v1569
  %v1598 = vmul.f32 1.0, %v1597
  %v1599 = vrcp.pop %v1570
  %v1600 = vmul.f32 1.0, %v1599
  %v1601 = vrcp.pop %v1571
  %v1602 = vmul.f32 1.0, %v1601
  %v1603 = vrcp.pop %v1572
  %v1604 = vmul.f32 1.0, %v1603
  %v1605 = vrcp.pop %v1573
  %v1606 = vmul.f32 1.0, %v1605
  %v1607 = vrcp.pop %v1574
  %v1608 = vmul.f32 1.0, %v1607
  %v1609 = vrcp.pop %v1575
  %v1610 = vmul.f32 1.0, %v1609
  %v1611 = vrcp.pop %v1576
  %v1612 = vmul.f32 1.0, %v1611
  %v1613 = vrcp.pop %v1577
  %v1614 = vmul.f32 1.0, %v1613
  %v1615 = vrcp.pop %v1578
  %v1616 = vmul.f32 1.0, %v1615
  %v1617 = vrcp.pop %v1579
  %v1618 = vmul.f32 1.0, %v1617
  %v1619 = vrcp.pop %v1580
  %v1620 = vmul.f32 1.0, %v1619
  %v1621 = vrcp.pop %v1581
  %v1622 = vmul.f32 1.0, %v1621
  %v1623 = vrcp.pop %v1582
  %v1624 = vmul.f32 1.0, %v1623
  %v1625 = vrcp.pop %v1583
  %v1626 = vmul.f32 1.0, %v1625
  %v1627 = vrcp.pop %v1584
  %v1628 = vmul.f32 1.0, %v1627
  %v1629 = vrcp.pop %v1585
  %v1630 = vmul.f32 1.0, %v1629
  %v1631 = vrcp.pop %v1586
  %v1632 = vmul.f32 1.0, %v1631
  %v1633 = vrcp.pop %v1587
  %v1634 = vmul.f32 1.0, %v1633
  %v1635 = vrcp.pop %v1588
  %v1636 = vmul.f32 1.0, %v1635
  %v1637 = vmul.f32 %v1446, %v1590
  %v1638 = vmul.f32 %v1448, %v1592
  %v1639 = vmul.f32 %v1450, %v1594
  %v1640 = vmul.f32 %v1452, %v1596
  %v1641 = vmul.f32 %v1454, %v1598
  %v1642 = vmul.f32 %v1456, %v1600
  %v1643 = vmul.f32 %v1458, %v1602
  %v1644 = vmul.f32 %v1460, %v1604
  %v1645 = vmul.f32 %v1462, %v1606
  %v1646 = vmul.f32 %v1464, %v1608
  %v1647 = vmul.f32 %v1466, %v1610
  %v1648 = vmul.f32 %v1468, %v1612
  %v1649 = vmul.f32 %v1470, %v1614
  %v1650 = vmul.f32 %v1472, %v1616
  %v1651 = vmul.f32 %v1474, %v1618
  %v1652 = vmul.f32 %v1476, %v1620
  %v1653 = vmul.f32 %v1478, %v1622
  %v1654 = vmul.f32 %v1480, %v1624
  %v1655 = vmul.f32 %v1482, %v1626
  %v1656 = vmul.f32 %v1484, %v1628
  %v1657 = vmul.f32 %v1486, %v1630
  %v1658 = vmul.f32 %v1488, %v1632
  %v1659 = vmul.f32 %v1490, %v1634
  %v1660 = vmul.f32 %v1492, %v1636
  %v1661 = vrot.slane %v1637, 4
  %v1662 = vmax.f32 %v1637, %v1661
  %v1663 = vrot.slane %v1662, 2
  %v1664 = vmax.f32 %v1662, %v1663
  %v1665 = vrot.slane %v1664, 1
  %v1666 = vmax.f32 %v1664, %v1665
  %v1667 = vrot.slane %v1638, 4
  %v1668 = vmax.f32 %v1638, %v1667
  %v1669 = vrot.slane %v1668, 2
  %v1670 = vmax.f32 %v1668, %v1669
  %v1671 = vrot.slane %v1670, 1
  %v1672 = vmax.f32 %v1670, %v1671
  %v1673 = vrot.slane %v1639, 4
  %v1674 = vmax.f32 %v1639, %v1673
  %v1675 = vrot.slane %v1674, 2
  %v1676 = vmax.f32 %v1674, %v1675
  %v1677 = vrot.slane %v1676, 1
  %v1678 = vmax.f32 %v1676, %v1677
  %v1679 = vrot.slane %v1640, 4
  %v1680 = vmax.f32 %v1640, %v1679
  %v1681 = vrot.slane %v1680, 2
  %v1682 = vmax.f32 %v1680, %v1681
  %v1683 = vrot.slane %v1682, 1
  %v1684 = vmax.f32 %v1682, %v1683
  %v1685 = vrot.slane %v1641, 4
  %v1686 = vmax.f32 %v1641, %v1685
  %v1687 = vrot.slane %v1686, 2
  %v1688 = vmax.f32 %v1686, %v1687
  %v1689 = vrot.slane %v1688, 1
  %v1690 = vmax.f32 %v1688, %v1689
  %v1691 = vrot.slane %v1642, 4
  %v1692 = vmax.f32 %v1642, %v1691
  %v1693 = vrot.slane %v1692, 2
  %v1694 = vmax.f32 %v1692, %v1693
  %v1695 = vrot.slane %v1694, 1
  %v1696 = vmax.f32 %v1694, %v1695
  %v1697 = vrot.slane %v1643, 4
  %v1698 = vmax.f32 %v1643, %v1697
  %v1699 = vrot.slane %v1698, 2
  %v1700 = vmax.f32 %v1698, %v1699
  %v1701 = vrot.slane %v1700, 1
  %v1702 = vmax.f32 %v1700, %v1701
  %v1703 = vrot.slane %v1644, 4
  %v1704 = vmax.f32 %v1644, %v1703
  %v1705 = vrot.slane %v1704, 2
  %v1706 = vmax.f32 %v1704, %v1705
  %v1707 = vrot.slane %v1706, 1
  %v1708 = vmax.f32 %v1706, %v1707
  %v1709 = vrot.slane %v1645, 4
  %v1710 = vmax.f32 %v1645, %v1709
  %v1711 = vrot.slane %v1710, 2
  %v1712 = vmax.f32 %v1710, %v1711
  %v1713 = vrot.slane %v1712, 1
  %v1714 = vmax.f32 %v1712, %v1713
  %v1715 = vrot.slane %v1646, 4
  %v1716 = vmax.f32 %v1646, %v1715
  %v1717 = vrot.slane %v1716, 2
  %v1718 = vmax.f32 %v1716, %v1717
  %v1719 = vrot.slane %v1718, 1
  %v1720 = vmax.f32 %v1718, %v1719
  %v1721 = vrot.slane %v1647, 4
  %v1722 = vmax.f32 %v1647, %v1721
  %v1723 = vrot.slane %v1722, 2
  %v1724 = vmax.f32 %v1722, %v1723
  %v1725 = vrot.slane %v1724, 1
  %v1726 = vmax.f32 %v1724, %v1725
  %v1727 = vrot.slane %v1648, 4
  %v1728 = vmax.f32 %v1648, %v1727
  %v1729 = vrot.slane %v1728, 2
  %v1730 = vmax.f32 %v1728, %v1729
  %v1731 = vrot.slane %v1730, 1
  %v1732 = vmax.f32 %v1730, %v1731
  %v1733 = vrot.slane %v1649, 4
  %v1734 = vmax.f32 %v1649, %v1733
  %v1735 = vrot.slane %v1734, 2
  %v1736 = vmax.f32 %v1734, %v1735
  %v1737 = vrot.slane %v1736, 1
  %v1738 = vmax.f32 %v1736, %v1737
  %v1739 = vrot.slane %v1650, 4
  %v1740 = vmax.f32 %v1650, %v1739
  %v1741 = vrot.slane %v1740, 2
  %v1742 = vmax.f32 %v1740, %v1741
  %v1743 = vrot.slane %v1742, 1
  %v1744 = vmax.f32 %v1742, %v1743
  %v1745 = vrot.slane %v1651, 4
  %v1746 = vmax.f32 %v1651, %v1745
  %v1747 = vrot.slane %v1746, 2
  %v1748 = vmax.f32 %v1746, %v1747
  %v1749 = vrot.slane %v1748, 1
  %v1750 = vmax.f32 %v1748, %v1749
  %v1751 = vrot.slane %v1652, 4
  %v1752 = vmax.f32 %v1652, %v1751
  %v1753 = vrot.slane %v1752, 2
  %v1754 = vmax.f32 %v1752, %v1753
  %v1755 = vrot.slane %v1754, 1
  %v1756 = vmax.f32 %v1754, %v1755
  %v1757 = vrot.slane %v1653, 4
  %v1758 = vmax.f32 %v1653, %v1757
  %v1759 = vrot.slane %v1758, 2
  %v1760 = vmax.f32 %v1758, %v1759
  %v1761 = vrot.slane %v1760, 1
  %v1762 = vmax.f32 %v1760, %v1761
  %v1763 = vrot.slane %v1654, 4
  %v1764 = vmax.f32 %v1654, %v1763
  %v1765 = vrot.slane %v1764, 2
  %v1766 = vmax.f32 %v1764, %v1765
  %v1767 = vrot.slane %v1766, 1
  %v1768 = vmax.f32 %v1766, %v1767
  %v1769 = vrot.slane %v1655, 4
  %v1770 = vmax.f32 %v1655, %v1769
  %v1771 = vrot.slane %v1770, 2
  %v1772 = vmax.f32 %v1770, %v1771
  %v1773 = vrot.slane %v1772, 1
  %v1774 = vmax.f32 %v1772, %v1773
  %v1775 = vrot.slane %v1656, 4
  %v1776 = vmax.f32 %v1656, %v1775
  %v1777 = vrot.slane %v1776, 2
  %v1778 = vmax.f32 %v1776, %v1777
  %v1779 = vrot.slane %v1778, 1
  %v1780 = vmax.f32 %v1778, %v1779
  %v1781 = vrot.slane %v1657, 4
  %v1782 = vmax.f32 %v1657, %v1781
  %v1783 = vrot.slane %v1782, 2
  %v1784 = vmax.f32 %v1782, %v1783
  %v1785 = vrot.slane %v1784, 1
  %v1786 = vmax.f32 %v1784, %v1785
  %v1787 = vrot.slane %v1658, 4
  %v1788 = vmax.f32 %v1658, %v1787
  %v1789 = vrot.slane %v1788, 2
  %v1790 = vmax.f32 %v1788, %v1789
  %v1791 = vrot.slane %v1790, 1
  %v1792 = vmax.f32 %v1790, %v1791
  %v1793 = vrot.slane %v1659, 4
  %v1794 = vmax.f32 %v1659, %v1793
  %v1795 = vrot.slane %v1794, 2
  %v1796 = vmax.f32 %v1794, %v1795
  %v1797 = vrot.slane %v1796, 1
  %v1798 = vmax.f32 %v1796, %v1797
  %v1799 = vrot.slane %v1660, 4
  %v1800 = vmax.f32 %v1660, %v1799
  %v1801 = vrot.slane %v1800, 2
  %v1802 = vmax.f32 %v1800, %v1801
  %v1803 = vrot.slane %v1802, 1
  %v1804 = vmax.f32 %v1802, %v1803
  %v1805 = vpack.c.bf16 %v1666, %v1666
  %v1806 = vpack.c.bf16 %v1672, %v1672
  %v1807 = vpack.c.bf16 %v1678, %v1678
  %v1808 = vpack.c.bf16 %v1684, %v1684
  %v1809 = vpack.c.bf16 %v1690, %v1690
  %v1810 = vpack.c.bf16 %v1696, %v1696
  %v1811 = vpack.c.bf16 %v1702, %v1702
  %v1812 = vpack.c.bf16 %v1708, %v1708
  %v1813 = vpack.c.bf16 %v1714, %v1714
  %v1814 = vpack.c.bf16 %v1720, %v1720
  %v1815 = vpack.c.bf16 %v1726, %v1726
  %v1816 = vpack.c.bf16 %v1732, %v1732
  %v1817 = vpack.c.bf16 %v1738, %v1738
  %v1818 = vpack.c.bf16 %v1744, %v1744
  %v1819 = vpack.c.bf16 %v1750, %v1750
  %v1820 = vpack.c.bf16 %v1756, %v1756
  %v1821 = vpack.c.bf16 %v1762, %v1762
  %v1822 = vpack.c.bf16 %v1768, %v1768
  %v1823 = vpack.c.bf16 %v1774, %v1774
  %v1824 = vpack.c.bf16 %v1780, %v1780
  %v1825 = vpack.c.bf16 %v1786, %v1786
  %v1826 = vpack.c.bf16 %v1792, %v1792
  %v1827 = vpack.c.bf16 %v1798, %v1798
  %v1828 = vpack.c.bf16 %v1804, %v1804
  %v1829 = vld [vmem:[%s2] sm:$0xf]
  %v1830 = vld [vmem:[%s2 + $0x4] sm:$0xf]
  %v1831 = vld [vmem:[%s2 + $0x8] sm:$0xf]
  %v1832 = vld [vmem:[%s2 + $0xc] sm:$0xf]
  %v1833 = vld [vmem:[%s2 + $0x10] sm:$0xf]
  %v1834 = vld [vmem:[%s2 + $0x14] sm:$0xf]
  %v1835 = vld [vmem:[%s2 + $0x18] sm:$0xf]
  %v1836 = vld [vmem:[%s2 + $0x1c] sm:$0xf]
  %v1837 = vld [vmem:[%s2 + $0x20] sm:$0xf]
  %v1838 = vld [vmem:[%s2 + $0x24] sm:$0xf]
  %v1839 = vld [vmem:[%s2 + $0x28] sm:$0xf]
  %v1840 = vld [vmem:[%s2 + $0x2c] sm:$0xf]
  %v1841 = vld [vmem:[%s2 + $0x30] sm:$0xf]
  %v1842 = vld [vmem:[%s2 + $0x34] sm:$0xf]
  %v1843 = vld [vmem:[%s2 + $0x38] sm:$0xf]
  %v1844 = vld [vmem:[%s2 + $0x3c] sm:$0xf]
  %v1845 = vld [vmem:[%s3] sm:$0x1]
  %v1847 = vlaneseq
  %v1848 = vshrl.u32 %v1847, 7
  %v1849 = vsub.s32 0, %v1848
  %v1850 = vrot.slane %v1845, %v1849
  %v1876 = vunpack.c.l.b16 %v1805
  %v1877 = vunpack.c.l.b16 %v1806
  %v1878 = vunpack.c.l.b16 %v1807
  %v1879 = vunpack.c.l.b16 %v1808
  %v1880 = vunpack.c.l.b16 %v1809
  %v1881 = vunpack.c.l.b16 %v1810
  %v1882 = vunpack.c.l.b16 %v1811
  %v1883 = vunpack.c.l.b16 %v1812
  %v1884 = vunpack.c.l.b16 %v1813
  %v1885 = vunpack.c.l.b16 %v1814
  %v1886 = vunpack.c.l.b16 %v1815
  %v1887 = vunpack.c.l.b16 %v1816
  %v1888 = vunpack.c.l.b16 %v1817
  %v1889 = vunpack.c.l.b16 %v1818
  %v1890 = vunpack.c.l.b16 %v1819
  %v1891 = vunpack.c.l.b16 %v1820
  %v1892 = vunpack.c.l.b16 %v1821
  %v1893 = vunpack.c.l.b16 %v1822
  %v1894 = vunpack.c.l.b16 %v1823
  %v1895 = vunpack.c.l.b16 %v1824
  %v1896 = vunpack.c.l.b16 %v1825
  %v1897 = vunpack.c.l.b16 %v1826
  %v1898 = vunpack.c.l.b16 %v1827
  %v1899 = vunpack.c.l.b16 %v1828
  %vm1900 = vcmask 1041409
  %v1901 = vsel %vm1900, %v1877, %v1876
  %vm1902 = vcmask 1042434
  %v1903 = vsel %vm1902, %v1878, %v1901
  %vm1904 = vcmask 1043459
  %v1905 = vsel %vm1904, %v1879, %v1903
  %vm1906 = vcmask 1044484
  %v1907 = vsel %vm1906, %v1880, %v1905
  %vm1908 = vcmask 1045509
  %v1909 = vsel %vm1908, %v1881, %v1907
  %vm1910 = vcmask 1046534
  %v1911 = vsel %vm1910, %v1882, %v1909
  %vm1912 = vcmask 1047559
  %v1913 = vsel %vm1912, %v1883, %v1911
  %v1914 = vsel %vm1900, %v1885, %v1884
  %v1915 = vsel %vm1902, %v1886, %v1914
  %v1916 = vsel %vm1904, %v1887, %v1915
  %v1917 = vsel %vm1906, %v1888, %v1916
  %v1918 = vsel %vm1908, %v1889, %v1917
  %v1919 = vsel %vm1910, %v1890, %v1918
  %v1920 = vsel %vm1912, %v1891, %v1919
  %v1921 = vsel %vm1900, %v1893, %v1892
  %v1922 = vsel %vm1902, %v1894, %v1921
  %v1923 = vsel %vm1904, %v1895, %v1922
  %v1924 = vsel %vm1906, %v1896, %v1923
  %v1925 = vsel %vm1908, %v1897, %v1924
  %v1926 = vsel %vm1910, %v1898, %v1925
  %v1927 = vsel %vm1912, %v1899, %v1926
  %v1928 = vpack.c.b16 %v1920, %v1913
  %v1929 = vpack.c.b16 %v1927, %v1927
  %v1948 = vunpack.c.l.b16 %v1829
  %v1949 = vunpack.c.l.b16 %v1830
  %v1950 = vunpack.c.l.b16 %v1831
  %v1951 = vunpack.c.l.b16 %v1832
  %v1952 = vunpack.c.l.b16 %v1833
  %v1953 = vunpack.c.l.b16 %v1834
  %v1954 = vunpack.c.l.b16 %v1835
  %v1955 = vunpack.c.l.b16 %v1836
  %v1956 = vunpack.c.l.b16 %v1837
  %v1957 = vunpack.c.l.b16 %v1838
  %v1958 = vunpack.c.l.b16 %v1839
  %v1959 = vunpack.c.l.b16 %v1840
  %v1960 = vunpack.c.l.b16 %v1841
  %v1961 = vunpack.c.l.b16 %v1842
  %v1962 = vunpack.c.l.b16 %v1843
  %v1963 = vunpack.c.l.b16 %v1844
  %v1964 = vpack.c.b16 %v1949, %v1948
  %v1965 = vpack.c.b16 %v1951, %v1950
  %v1966 = vpack.c.b16 %v1953, %v1952
  %v1967 = vpack.c.b16 %v1955, %v1954
  %v1968 = vpack.c.b16 %v1957, %v1956
  %v1969 = vpack.c.b16 %v1959, %v1958
  %v1970 = vpack.c.b16 %v1961, %v1960
  %v1971 = vpack.c.b16 %v1963, %v1962
  %1980 = vmatprep.subr.bf16.mxu0 0
  %1981 = vmatpush1.bf16.msra.mxu0 %v1964
  %1982 = vmatprep.subr.bf16.mxu0 0
  %1983 = vmatpush1.bf16.msra.mxu0 %v1965
  %1984 = vmatprep.subr.bf16.mxu0 0
  %1985 = vmatpush1.bf16.msra.mxu0 %v1966
  %1986 = vmatprep.subr.bf16.mxu0 0
  %1987 = vmatpush1.bf16.msra.mxu0 %v1967
  %1988 = vmatprep.subr.bf16.mxu0 0
  %1989 = vmatpush1.bf16.msra.mxu0 %v1968
  %1990 = vmatprep.subr.bf16.mxu0 0
  %1991 = vmatpush1.bf16.msra.mxu0 %v1969
  %1992 = vmatprep.subr.bf16.mxu0 0
  %1993 = vmatpush1.bf16.msra.mxu0 %v1970
  %1994 = vmatprep.subr.bf16.mxu0 0
  %1995 = vmatpush1.bf16.msra.mxu0 %v1971
  %1996 = vmatprep.subr.bf16.mxu0 0
  %1997 = vmatpush1.bf16.msra.mxu0 0
  %1998 = vmatprep.subr.bf16.mxu0 0
  %1999 = vmatpush1.bf16.msra.mxu0 0
  %2000 = vmatprep.subr.bf16.mxu0 0
  %2001 = vmatpush1.bf16.msra.mxu0 0
  %2002 = vmatprep.subr.bf16.mxu0 0
  %2003 = vmatpush1.bf16.msra.mxu0 0
  %2004 = vmatprep.subr.bf16.mxu0 0
  %2005 = vmatpush1.bf16.msra.mxu0 0
  %2006 = vmatprep.subr.bf16.mxu0 0
  %2007 = vmatpush1.bf16.msra.mxu0 0
  %2008 = vmatprep.subr.bf16.mxu0 0
  %2009 = vmatpush1.bf16.msra.mxu0 0
  %2010 = vmatprep.subr.bf16.mxu0 0
  %2011 = vmatpush1.bf16.msra.mxu0 0
  %2012 = vmatprep.mubr.bf16.mxu0 0
  %2013 = vmatmul.mubr.bf16.gmra.mrb[0].mxu0 %v1928
  %v2014 = vpop.f32.mrb[0].mxu0
  %v2015 = vadd.f32 %v1850, %v2014
  %v2016 = vpop.f32.mrb[0].mxu0
  %v2017 = vpop.f32.mrb[0].mxu0
  %v2018 = vadd.f32 %v1850, %v2017
  %v2019 = vpop.f32.mrb[0].mxu0
  %2020 = vmatprep.mubr.bf16.mxu0 0
  %2021 = vmatmul.mubr.bf16.gmra.mrb[0].mxu0 %v1929
  %v2022 = vpop.f32.mrb[0].mxu0
  %v2023 = vadd.f32 %v1850, %v2022
  %v2024 = vpop.f32.mrb[0].mxu0
  %v2025 = vpop.f32.mrb[0].mxu0
  %v2026 = vpop.f32.mrb[0].mxu0
  %2027 = vdwg.mxu0
  %v2028 = vmul.f32 %v2015, %v2018
  %2029 = vadd.xlane.f32.xlu0 %v2028
  %v2030 = vpop.xlane.xlu0 %2029
  %v2031 = vmul.f32 %v2015, %v2015
  %2032 = vadd.xlane.f32.xlu0 %v2031
  %v2033 = vpop.xlane.xlu0 %2032
  %v2034 = vmul.f32 %v2018, %v2018
  %2035 = vadd.xlane.f32.xlu0 %v2034
  %v2036 = vpop.xlane.xlu0 %2035
  %v2037 = vmul.f32 %v2033, %v2036
  %v2038 = vmax.f32 %v2037, 1e-16
  %v2039 = vrsqrt.pop %v2038
  %v2040 = vmul.f32 %v2030, %v2039
  %v2041 = vsub.f32 1.0, %v2040
  %v2042 = vmul.f32 %v2015, %v2023
  %2043 = vadd.xlane.f32.xlu0 %v2042
  %v2044 = vpop.xlane.xlu0 %2043
  %v2045 = vmul.f32 %v2023, %v2023
  %2046 = vadd.xlane.f32.xlu0 %v2045
  %v2047 = vpop.xlane.xlu0 %2046
  %v2048 = vmul.f32 %v2033, %v2047
  %v2049 = vmax.f32 %v2048, 1e-16
  %v2050 = vrsqrt.pop %v2049
  %v2051 = vmul.f32 %v2044, %v2050
  %v2052 = vsub.f32 1.0, %v2051
  %v2053 = vsub.f32 %v2041, %v2052
  %v2054 = vadd.f32 %v2053, 0.1
  %v2055 = vmax.f32 %v2054, 0.0
  %vm2056 = vcmask 7168
  %2057 = vst.msk [vmem:[%s4] sm:$0xff] %vm2056, %v2055
  // Predicated region
  $region18: #{dic_model_forward.1} parent=0 // pred_check
    _
  $region19: #{dic_model_forward.1} parent=0 // pred_check_branch
    %2059 = sbr.rel (0) target = $region21
  $region20: #{dic_model_forward.1} parent=0 // pred_region
    _
  $region21: #{dic_model_forward.1} parent=0 // pred_fallthru
    _
  // Predicated region
  $region22: #{dic_model_forward.1} parent=0 // pred_check
    _
  $region23: #{dic_model_forward.1} parent=0 // pred_check_branch
    %2061 = sbr.rel (0) target = $region25
  $region24: #{dic_model_forward.1} parent=0 // pred_region
    _
  $region25: #{dic_model_forward.1} parent=0 // pred_fallthru
    _

</llo_original>
